<compile_context>
chip_gen: v6e
topology: v6e:2x2x1
jax: 0.10.0
libtpu: 0.0.40
codegen_flags: <defaults>
</compile_context>

<pallas_src>
import math
import functools

import jax
import jax.numpy as jnp
from jax.experimental import pallas as pl
from jax.experimental.pallas import tpu as pltpu


def _msr_kernel(qi_ref, ki_ref,                      # scalar-prefetch (SMEM)
                x_ref, qp_ref, kp_ref, vp_ref,       # inputs
                wg_ref, wo_ref, gnw_ref, gnb_ref,
                o_ref,                               # output
                acc_ref, qsc_ref, *,                 # scratch
                heads, head_size, log_gammas, block_q, block_k, eps, cdtype):
    t = pl.program_id(1)
    qi = qi_ref[t]
    ki = ki_ref[t]
    q_start = qi * block_q
    k_start = ki * block_k

    @pl.when(ki == 0)
    def _init():
        acc_ref[...] = jnp.zeros_like(acc_ref)
        # Bake the per-head decay row-scale gamma^(n - q_start) into the cached
        # (already projected) Q tile; constant across all kv steps of this qi.
        n_local = jax.lax.broadcasted_iota(jnp.int32, (block_q, 1), 0)
        n_local = n_local.astype(jnp.float32)
        qp = qp_ref[...].astype(jnp.float32)
        pieces = []
        for h in range(heads):
            sl = slice(h * head_size, (h + 1) * head_size)
            pieces.append(qp[:, sl] * jnp.exp(log_gammas[h] * n_local))
        qsc_ref[...] = jnp.concatenate(pieces, axis=-1).astype(qsc_ref.dtype)

    def _accumulate(masked):
        q_all = qsc_ref[...]                     # (tq, hv), decay-scaled, cdtype
        k_all = kp_ref[...]                      # (tk, hv), cdtype
        v_all = vp_ref[...]                      # (tk, hv), cdtype
        # K-side decay scale gamma^(q_start - m): bounded above by
        # gamma^-(block-1) within a tile; decays (flushing to ~0, matching the
        # true decay) for kv tiles far below the diagonal.
        m_local = jax.lax.broadcasted_iota(jnp.int32, (block_k, 1), 0)
        base = (q_start - k_start).astype(jnp.float32) - m_local.astype(jnp.float32)
        if masked:
            n2 = jax.lax.broadcasted_iota(jnp.int32, (block_q, block_k), 0)
            m2 = jax.lax.broadcasted_iota(jnp.int32, (block_q, block_k), 1)
            causal = (n2 + q_start) >= (m2 + k_start)
        ys = []
        # TODO(synk): for heads >= ~8 convert to lax.fori_loop if spills show up.
        for h in range(heads):
            sl = slice(h * head_size, (h + 1) * head_size)
            kscale = jnp.exp(log_gammas[h] * base).astype(k_all.dtype)   # (tk,1)
            kh = k_all[:, sl] * kscale
            s = jnp.dot(q_all[:, sl], kh.T, preferred_element_type=jnp.float32)
            if masked:
                s = jnp.where(causal, s, jnp.float32(0.0))
            # Note: in the bf16 path the decayed scores are rounded to bf16
            # before ret @ V (acceptable at the documented tolerance).
            ys.append(jnp.dot(s.astype(cdtype), v_all[:, sl],
                              preferred_element_type=jnp.float32))
        # Single lane-dense accumulate per step (no per-head masked RMW stores).
        acc_ref[...] += jnp.concatenate(ys, axis=-1)

    # Causal mask only needed on tiles intersecting the diagonal.
    needs_mask = (k_start + block_k - 1) > q_start

    @pl.when(needs_mask)
    def _masked():
        _accumulate(True)

    @pl.when(jnp.logical_not(needs_mask))
    def _unmasked():
        _accumulate(False)

    # Last kv tile for this q tile  <=>  next kv tile would start past q_end.
    is_last = (k_start + block_k) >= (q_start + block_q)

    @pl.when(is_last)
    def _finalize():
        # GroupNorm(num_groups=heads): per row, normalize each head's
        # head_size channels (biased variance, eps inside sqrt), then affine.
        y = acc_ref[...]                                      # (tq, v_dim) f32
        pieces = []
        for h in range(heads):
            sl = slice(h * head_size, (h + 1) * head_size)
            yh = y[:, sl]
            mean = jnp.mean(yh, axis=-1, keepdims=True)
            var = jnp.mean(jnp.square(yh - mean), axis=-1, keepdims=True)
            pieces.append((yh - mean) * jax.lax.rsqrt(var + eps))
        yn = jnp.concatenate(pieces, axis=-1) * gnw_ref[...] + gnb_ref[...]

        g = jnp.dot(x_ref[...].astype(cdtype), wg_ref[...],
                    preferred_element_type=jnp.float32)
        g = g * jax.nn.sigmoid(g)                             # swish, f32
        out = jnp.dot((g * yn).astype(cdtype), wo_ref[...],
                      preferred_element_type=jnp.float32)
        o_ref[...] = out.astype(o_ref.dtype)


def multi_scale_retention(x, wq, wk, wv, gammas, wg, wo, gn_w, gn_b, *,
                          eps=1e-5, block_q=None, block_k=None,
                          matmul_dtype=None):
    """x: (B, S, H); wq/wk/wv: (heads, H, head_size); wg: (H, v_dim);
    wo: (v_dim, H); gn_w/gn_b: (1, v_dim); gammas: python floats per head."""
    B, S, H = x.shape
    heads, _, head_size = wq.shape
    v_dim = wg.shape[1]
    hv = heads * head_size
    assert hv == v_dim, "double_v_dim=False layout expected"
    # TODO(synk): double_v_dim=True (v_dim = 2*hidden) path not implemented.

    # 128 tiles are the portable default (v5e MXU is 4x128x128); use 256 on
    # v6e/v7x together with matmul_dtype=bf16 for the 2x256x256 MXU.
    if block_q is None:
        block_q = min(S, 128)
    if block_k is None:
        block_k = min(S, 128)
    assert S % block_q == 0 and S % block_k == 0

    cdtype = jnp.dtype(matmul_dtype) if matmul_dtype is not None else jnp.dtype(jnp.float32)

    # ---- Hoisted projections: one lane-dense GEMM each (XLA), streamed into
    # the kernel as (block, heads*head_size) tiles.  W_Q/W_K/W_V never enter
    # the kernel's VMEM and are never re-applied per q-tile.
    wq_all = jnp.transpose(wq, (1, 0, 2)).reshape(H, hv)
    wk_all = jnp.transpose(wk, (1, 0, 2)).reshape(H, hv)
    wv_all = jnp.transpose(wv, (1, 0, 2)).reshape(H, hv)
    xf = x.astype(jnp.float32)
    q_proj = jnp.einsum("bsh,hd->bsd", xf, wq_all).astype(cdtype)
    k_proj = jnp.einsum("bsh,hd->bsd", xf, wk_all).astype(cdtype)
    v_proj = jnp.einsum("bsh,hd->bsd", xf, wv_all).astype(cdtype)
    wg_c = wg.astype(cdtype)
    wo_c = wo.astype(cdtype)
    gn_w_c = gn_w.astype(jnp.float32)
    gn_b_c = gn_b.astype(jnp.float32)

    log_gammas = tuple(float(math.log(g)) for g in gammas)

    # ---- Flattened lower-triangular (q-tile, kv-tile) step list: only causal
    # pairs are enumerated.  The indices are scalar-prefetched into SMEM and
    # drive every index_map, so dead upper-triangular grid steps never exist.
    nq = S // block_q
    qi_list, ki_list = [], []
    for qi in range(nq):
        last_ki = (qi * block_q + block_q - 1) // block_k
        for ki in range(last_ki + 1):
            qi_list.append(qi)
            ki_list.append(ki)
    qi_arr = jnp.asarray(qi_list, dtype=jnp.int32)
    ki_arr = jnp.asarray(ki_list, dtype=jnp.int32)
    T = len(qi_list)

    kernel = functools.partial(
        _msr_kernel, heads=heads, head_size=head_size, log_gammas=log_gammas,
        block_q=block_q, block_k=block_k, eps=eps, cdtype=cdtype)

    # VMEM estimate (double-buffered blocks + scratch) with headroom, instead
    # of a hard-coded limit.
    csize = jnp.dtype(cdtype).itemsize
    xsize = jnp.dtype(x.dtype).itemsize
    est = 2 * (block_q * H * xsize                       # X q-tile
               + block_q * hv * csize                    # Q proj tile
               + 2 * block_k * hv * csize                # K / V proj tiles
               + H * v_dim * csize + v_dim * H * csize   # W_G, W_O
               + 2 * v_dim * 4                           # GN affine
               + block_q * H * xsize)                    # output tile
    est += block_q * v_dim * 4 + block_q * hv * csize    # acc + scaled-Q scratch
    vmem_limit = int(min((24 << 20) + 2 * est, 100 << 20))

    return pl.pallas_call(
        kernel,
        out_shape=jax.ShapeDtypeStruct((B, S, H), x.dtype),
        grid_spec=pltpu.PrefetchScalarGridSpec(
            num_scalar_prefetch=2,
            grid=(B, T),
            in_specs=[
                pl.BlockSpec((None, block_q, H),
                             lambda b, t, qs, ks: (b, qs[t], 0)),   # X (q tile, gate)
                pl.BlockSpec((None, block_q, hv),
                             lambda b, t, qs, ks: (b, qs[t], 0)),   # Q proj tile
                pl.BlockSpec((None, block_k, hv),
                             lambda b, t, qs, ks: (b, ks[t], 0)),   # K proj tile
                pl.BlockSpec((None, block_k, hv),
                             lambda b, t, qs, ks: (b, ks[t], 0)),   # V proj tile
                pl.BlockSpec((H, v_dim), lambda b, t, qs, ks: (0, 0)),  # W_G
                pl.BlockSpec((v_dim, H), lambda b, t, qs, ks: (0, 0)),  # W_O
                pl.BlockSpec((1, v_dim), lambda b, t, qs, ks: (0, 0)),  # GN weight
                pl.BlockSpec((1, v_dim), lambda b, t, qs, ks: (0, 0)),  # GN bias
            ],
            out_specs=pl.BlockSpec((None, block_q, H),
                                   lambda b, t, qs, ks: (b, qs[t], 0)),
            scratch_shapes=[
                pltpu.VMEM((block_q, v_dim), jnp.float32),   # retention accumulator
                pltpu.VMEM((block_q, hv), cdtype),           # decay-scaled Q cache
            ],
        ),
        compiler_params=pltpu.CompilerParams(
            dimension_semantics=("parallel", "arbitrary"),
            vmem_limit_bytes=vmem_limit,
        ),
    )(qi_arr, ki_arr, x, q_proj, k_proj, v_proj, wg_c, wo_c, gn_w_c, gn_b_c)


def _reference(x, wq, wk, wv, gammas, wg, wo, gn_w, gn_b, eps=1e-5):
    """Pure-JAX reference mirroring the PyTorch parallel forward."""
    B, S, H = x.shape
    heads, _, head_size = wq.shape
    n = jnp.arange(S)[:, None]
    m = jnp.arange(S)[None, :]
    ys = []
    for h in range(heads):
        d = jnp.where(n >= m,
                      jnp.float32(gammas[h]) ** (n - m).astype(jnp.float32),
                      0.0)
        q = x @ wq[h]
        k = x @ wk[h]
        v = x @ wv[h]
        ret = (q @ jnp.swapaxes(k, -1, -2)) * d[None]
        ys.append(ret @ v)
    Y = jnp.concatenate(ys, axis=2)                          # (B, S, v_dim)
    V = Y.shape[-1]
    Yg = Y.reshape(B * S, heads, head_size)
    mean = Yg.mean(axis=-1, keepdims=True)
    var = ((Yg - mean) ** 2).mean(axis=-1, keepdims=True)
    Yn = ((Yg - mean) / jnp.sqrt(var + eps)).reshape(B * S, V)
    Yn = (Yn * gn_w[0][None, :] + gn_b[0][None, :]).reshape(B, S, V)
    g = x @ wg
    g = g * jax.nn.sigmoid(g)
    return (g * Yn) @ wo


if __name__ == "__main__":
    B, S, H = 2, 16, 32
    heads = 4
    head_size = H // heads
    v_dim = H  # double_v_dim = False

    key = jax.random.PRNGKey(0)
    ks = jax.random.split(key, 6)

    x = jax.random.normal(ks[0], (B, S, H), dtype=jnp.float32)
    wq = jax.random.normal(ks[1], (heads, H, head_size), dtype=jnp.float32) / H
    wk = jax.random.normal(ks[2], (heads, H, head_size), dtype=jnp.float32) / H
    wv = jax.random.normal(ks[3], (heads, H, head_size), dtype=jnp.float32) / H
    wg = jax.random.normal(ks[4], (H, v_dim), dtype=jnp.float32) / H
    wo = jax.random.normal(ks[5], (v_dim, H), dtype=jnp.float32) / H
    # PyTorch GroupNorm default affine init: weight=1, bias=0.
    gn_w = jnp.ones((1, v_dim), dtype=jnp.float32)
    gn_b = jnp.zeros((1, v_dim), dtype=jnp.float32)

    # gammas = 1 - exp(linspace(log(1/32), log(1/512), heads)) as in the module.
    gammas = [1.0 - math.exp(math.log(1 / 32)
                             + (math.log(1 / 512) - math.log(1 / 32)) * i / (heads - 1))
              for i in range(heads)]

    ref = _reference(x, wq, wk, wv, gammas, wg, wo, gn_w, gn_b)

    # f32, sequence tiled 8x8 -> flattened triangular grid of 3 steps per batch:
    # exercises init / accumulate / masked-diagonal / unmasked / finalize paths.
    out = multi_scale_retention(x, wq, wk, wv, gammas, wg, wo, gn_w, gn_b,
                                block_q=8, block_k=8)
    out = jax.block_until_ready(out)
    assert out.shape == (B, S, H)
    assert jnp.allclose(out, ref, atol=5e-4, rtol=5e-4), "f32 tiled mismatch vs reference"

    # f32, single full-sequence tile (default block sizes).
    out_full = multi_scale_retention(x, wq, wk, wv, gammas, wg, wo, gn_w, gn_b)
    out_full = jax.block_until_ready(out_full)
    assert jnp.allclose(out_full, ref, atol=5e-4, rtol=5e-4), "f32 full-tile mismatch"

    # bf16 MXU inputs (v6e/v7x fast path), f32 accumulation / elementwise.
    out_bf16 = multi_scale_retention(x, wq, wk, wv, gammas, wg, wo, gn_w, gn_b,
                                     block_q=8, block_k=8,
                                     matmul_dtype=jnp.bfloat16)
    out_bf16 = jax.block_until_ready(out_bf16)
    assert jnp.allclose(out_bf16, ref, atol=5e-2, rtol=5e-2), "bf16 mismatch vs reference"

    print("KERNEL_OK")
</pallas_src>

<mosaic_0001>
module attributes {stable_mosaic.version = 11 : i64} {
  func.func @_msr_kernel(%arg0: i32, %arg1: i32, %arg2: memref<3xi32, #tpu.memory_space<smem>>, %arg3: memref<3xi32, #tpu.memory_space<smem>>, %arg4: memref<1x8x32xf32, #tpu.memory_space<vmem>>, %arg5: memref<1x8x32xf32, #tpu.memory_space<vmem>>, %arg6: memref<1x8x32xf32, #tpu.memory_space<vmem>>, %arg7: memref<1x8x32xf32, #tpu.memory_space<vmem>>, %arg8: memref<32x32xf32, #tpu.memory_space<vmem>>, %arg9: memref<32x32xf32, #tpu.memory_space<vmem>>, %arg10: memref<1x32xf32, #tpu.memory_space<vmem>>, %arg11: memref<1x32xf32, #tpu.memory_space<vmem>>, %arg12: memref<1x8x32xf32, #tpu.memory_space<vmem>>, %arg13: memref<8x32xf32, #tpu.memory_space<vmem>>, %arg14: memref<8x32xf32, #tpu.memory_space<vmem>>) attributes {dimension_semantics = [#tpu.dimension_semantics<parallel>, #tpu.dimension_semantics<arbitrary>], iteration_bounds = array<i64: 2, 3>, scalar_prefetch = 2 : i64, scratch_operands = 2 : i64, tpu.core_type = #tpu.core_type<tc>, window_params = [{transform_indices = @transform_0, window_bounds = array<i64: 1, 8, 32>}, {transform_indices = @transform_1, window_bounds = array<i64: 1, 8, 32>}, {transform_indices = @transform_2, window_bounds = array<i64: 1, 8, 32>}, {transform_indices = @transform_3, window_bounds = array<i64: 1, 8, 32>}, {pipeline_mode = #tpu.pipeline_mode<synchronous>, transform_indices = @transform_4, window_bounds = array<i64: 32, 32>}, {pipeline_mode = #tpu.pipeline_mode<synchronous>, transform_indices = @transform_5, window_bounds = array<i64: 32, 32>}, {pipeline_mode = #tpu.pipeline_mode<synchronous>, transform_indices = @transform_6, window_bounds = array<i64: 1, 32>}, {pipeline_mode = #tpu.pipeline_mode<synchronous>, transform_indices = @transform_7, window_bounds = array<i64: 1, 32>}, {transform_indices = @transform_8, window_bounds = array<i64: 1, 8, 32>}]} {
    %0 = arith.index_cast %arg1 : i32 to index
    %1 = memref.load %arg2[%0] : memref<3xi32, #tpu.memory_space<smem>>
    %2 = arith.index_cast %arg1 : i32 to index
    %3 = memref.load %arg3[%2] : memref<3xi32, #tpu.memory_space<smem>>
    %c8_i32 = arith.constant 8 : i32
    %4 = arith.muli %1, %c8_i32 : i32
    %c8_i32_0 = arith.constant 8 : i32
    %5 = arith.muli %3, %c8_i32_0 : i32
    %c0_i32 = arith.constant 0 : i32
    %6 = arith.cmpi eq, %3, %c0_i32 : i32
    %7 = arith.extui %6 : i1 to i32
    %c0_i32_1 = arith.constant 0 : i32
    %8 = arith.cmpi ne, %7, %c0_i32_1 : i32
    scf.if %8 {
      %cst = arith.constant 0.000000e+00 : f32
      %22 = vector.broadcast %cst : f32 to vector<8x32xf32>
      %c0 = arith.constant 0 : index
      %c0_8 = arith.constant 0 : index
      %23 = vector.load %arg13[%c0, %c0_8] : memref<8x32xf32, #tpu.memory_space<vmem>>, vector<8x32xf32>
      tpu.vector_store %arg13[%c0, %c0_8], %22 {strides = array<i32>} : memref<8x32xf32, #tpu.memory_space<vmem>>, vector<8x32xf32>,
      %24 = tpu.iota {dimensions = array<i32: 0>} : vector<8x1xi32>
      %25 = arith.sitofp %24 : vector<8x1xi32> to vector<8x1xf32>
      %c0_9 = arith.constant 0 : index
      %c0_10 = arith.constant 0 : index
      %c0_11 = arith.constant 0 : index
      %26 = vector.load %arg5[%c0_9, %c0_10, %c0_11] : memref<1x8x32xf32, #tpu.memory_space<vmem>>, vector<1x8x32xf32>
      %27 = vector.shape_cast %26 : vector<1x8x32xf32> to vector<8x32xf32>
      %28 = vector.extract_strided_slice %27 {offsets = [0, 0], sizes = [8, 8], strides = [1, 1]} : vector<8x32xf32> to vector<8x8xf32>
      %cst_12 = arith.constant -0.0317486972 : f32
      %29 = vector.broadcast %cst_12 : f32 to vector<8x1xf32>
      %30 = arith.mulf %29, %25 : vector<8x1xf32>
      %31 = math.exp %30 : vector<8x1xf32>
      %32 = vector.broadcast %31 : vector<8x1xf32> to vector<8x8xf32>
      %33 = arith.mulf %28, %32 : vector<8x8xf32>
      %34 = vector.extract_strided_slice %27 {offsets = [0, 8], sizes = [8, 8], strides = [1, 1]} : vector<8x32xf32> to vector<8x8xf32>
      %cst_13 = arith.constant -0.0124791116 : f32
      %35 = vector.broadcast %cst_13 : f32 to vector<8x1xf32>
      %36 = arith.mulf %35, %25 : vector<8x1xf32>
      %37 = math.exp %36 : vector<8x1xf32>
      %38 = vector.broadcast %37 : vector<8x1xf32> to vector<8x8xf32>
      %39 = arith.mulf %34, %38 : vector<8x8xf32>
      %40 = vector.extract_strided_slice %27 {offsets = [0, 16], sizes = [8, 8], strides = [1, 1]} : vector<8x32xf32> to vector<8x8xf32>
      %cst_14 = arith.constant -0.00493371719 : f32
      %41 = vector.broadcast %cst_14 : f32 to vector<8x1xf32>
      %42 = arith.mulf %41, %25 : vector<8x1xf32>
      %43 = math.exp %42 : vector<8x1xf32>
      %44 = vector.broadcast %43 : vector<8x1xf32> to vector<8x8xf32>
      %45 = arith.mulf %40, %44 : vector<8x8xf32>
      %46 = vector.extract_strided_slice %27 {offsets = [0, 24], sizes = [8, 8], strides = [1, 1]} : vector<8x32xf32> to vector<8x8xf32>
      %cst_15 = arith.constant -0.00195503491 : f32
      %47 = vector.broadcast %cst_15 : f32 to vector<8x1xf32>
      %48 = arith.mulf %47, %25 : vector<8x1xf32>
      %49 = math.exp %48 : vector<8x1xf32>
      %50 = vector.broadcast %49 : vector<8x1xf32> to vector<8x8xf32>
      %51 = arith.mulf %46, %50 : vector<8x8xf32>
      %52 = tpu.concatenate %33, %39, %45, %51 in 1 : vector<8x8xf32>, vector<8x8xf32>, vector<8x8xf32>, vector<8x8xf32> -> vector<8x32xf32>
      %c0_16 = arith.constant 0 : index
      %c0_17 = arith.constant 0 : index
      %53 = vector.load %arg14[%c0_16, %c0_17] : memref<8x32xf32, #tpu.memory_space<vmem>>, vector<8x32xf32>
      tpu.vector_store %arg14[%c0_16, %c0_17], %52 {strides = array<i32>} : memref<8x32xf32, #tpu.memory_space<vmem>>, vector<8x32xf32>,
    } else {
    }
    %c8_i32_2 = arith.constant 8 : i32
    %9 = arith.addi %5, %c8_i32_2 : i32
    %c1_i32 = arith.constant 1 : i32
    %10 = arith.subi %9, %c1_i32 : i32
    %11 = arith.cmpi sgt, %10, %4 : i32
    %12 = arith.extui %11 : i1 to i32
    %c0_i32_3 = arith.constant 0 : i32
    %13 = arith.cmpi ne, %12, %c0_i32_3 : i32
    scf.if %13 {
      %c0 = arith.constant 0 : index
      %c0_8 = arith.constant 0 : index
      %22 = vector.load %arg14[%c0, %c0_8] : memref<8x32xf32, #tpu.memory_space<vmem>>, vector<8x32xf32>
      %c0_9 = arith.constant 0 : index
      %c0_10 = arith.constant 0 : index
      %c0_11 = arith.constant 0 : index
      %23 = vector.load %arg6[%c0_9, %c0_10, %c0_11] : memref<1x8x32xf32, #tpu.memory_space<vmem>>, vector<1x8x32xf32>
      %24 = vector.shape_cast %23 : vector<1x8x32xf32> to vector<8x32xf32>
      %c0_12 = arith.constant 0 : index
      %c0_13 = arith.constant 0 : index
      %c0_14 = arith.constant 0 : index
      %25 = vector.load %arg7[%c0_12, %c0_13, %c0_14] : memref<1x8x32xf32, #tpu.memory_space<vmem>>, vector<1x8x32xf32>
      %26 = vector.shape_cast %25 : vector<1x8x32xf32> to vector<8x32xf32>
      %27 = tpu.iota {dimensions = array<i32: 0>} : vector<8x1xi32>
      %28 = arith.subi %4, %5 : i32
      %29 = arith.sitofp %28 : i32 to f32
      %30 = arith.sitofp %27 : vector<8x1xi32> to vector<8x1xf32>
      %31 = vector.broadcast %29 : f32 to vector<8x1xf32>
      %32 = arith.subf %31, %30 : vector<8x1xf32>
      %33 = tpu.iota {dimensions = array<i32: 0>} : vector<8x8xi32>
      %34 = tpu.iota {dimensions = array<i32: 1>} : vector<8x8xi32>
      %35 = vector.broadcast %4 : i32 to vector<8x8xi32>
      %36 = arith.addi %33, %35 : vector<8x8xi32>
      %37 = vector.broadcast %5 : i32 to vector<8x8xi32>
      %38 = arith.addi %34, %37 : vector<8x8xi32>
      %39 = arith.cmpi sge, %36, %38 : vector<8x8xi32>
      %cst = arith.constant -0.0317486972 : f32
      %40 = vector.broadcast %cst : f32 to vector<8x1xf32>
      %41 = arith.mulf %40, %32 : vector<8x1xf32>
      %42 = math.exp %41 : vector<8x1xf32>
      %43 = vector.extract_strided_slice %24 {offsets = [0, 0], sizes = [8, 8], strides = [1, 1]} : vector<8x32xf32> to vector<8x8xf32>
      %44 = vector.broadcast %42 : vector<8x1xf32> to vector<8x8xf32>
      %45 = arith.mulf %43, %44 : vector<8x8xf32>
      %46 = vector.extract_strided_slice %22 {offsets = [0, 0], sizes = [8, 8], strides = [1, 1]} : vector<8x32xf32> to vector<8x8xf32>
      %47 = tpu.transpose %45, [1, 0] : vector<8x8xf32> -> vector<8x8xf32>
      %cst_15 = arith.constant dense<0.000000e+00> : vector<8x8xf32>
      %48 = tpu.matmul %46, %47, %cst_15 {dimension_numbers = #tpu.dot_dimension_numbers<[1], [0], [0], [1], [0, 0, 1, 1], [], []>} : vector<8x8xf32>, vector<8x8xf32>, vector<8x8xf32> -> vector<8x8xf32>
      %cst_16 = arith.constant 0.000000e+00 : f32
      %49 = vector.broadcast %cst_16 : f32 to vector<8x8xf32>
      %50 = arith.select %39, %48, %49 : vector<8x8xi1>, vector<8x8xf32>
      %51 = vector.extract_strided_slice %26 {offsets = [0, 0], sizes = [8, 8], strides = [1, 1]} : vector<8x32xf32> to vector<8x8xf32>
      %cst_17 = arith.constant dense<0.000000e+00> : vector<8x8xf32>
      %52 = tpu.matmul %50, %51, %cst_17 {dimension_numbers = #tpu.dot_dimension_numbers<[1], [0], [0], [1], [0, 0, 1, 1], [], []>} : vector<8x8xf32>, vector<8x8xf32>, vector<8x8xf32> -> vector<8x8xf32>
      %cst_18 = arith.constant -0.0124791116 : f32
      %53 = vector.broadcast %cst_18 : f32 to vector<8x1xf32>
      %54 = arith.mulf %53, %32 : vector<8x1xf32>
      %55 = math.exp %54 : vector<8x1xf32>
      %56 = vector.extract_strided_slice %24 {offsets = [0, 8], sizes = [8, 8], strides = [1, 1]} : vector<8x32xf32> to vector<8x8xf32>
      %57 = vector.broadcast %55 : vector<8x1xf32> to vector<8x8xf32>
      %58 = arith.mulf %56, %57 : vector<8x8xf32>
      %59 = vector.extract_strided_slice %22 {offsets = [0, 8], sizes = [8, 8], strides = [1, 1]} : vector<8x32xf32> to vector<8x8xf32>
      %60 = tpu.transpose %58, [1, 0] : vector<8x8xf32> -> vector<8x8xf32>
      %cst_19 = arith.constant dense<0.000000e+00> : vector<8x8xf32>
      %61 = tpu.matmul %59, %60, %cst_19 {dimension_numbers = #tpu.dot_dimension_numbers<[1], [0], [0], [1], [0, 0, 1, 1], [], []>} : vector<8x8xf32>, vector<8x8xf32>, vector<8x8xf32> -> vector<8x8xf32>
      %cst_20 = arith.constant 0.000000e+00 : f32
      %62 = vector.broadcast %cst_20 : f32 to vector<8x8xf32>
      %63 = arith.select %39, %61, %62 : vector<8x8xi1>, vector<8x8xf32>
      %64 = vector.extract_strided_slice %26 {offsets = [0, 8], sizes = [8, 8], strides = [1, 1]} : vector<8x32xf32> to vector<8x8xf32>
      %cst_21 = arith.constant dense<0.000000e+00> : vector<8x8xf32>
      %65 = tpu.matmul %63, %64, %cst_21 {dimension_numbers = #tpu.dot_dimension_numbers<[1], [0], [0], [1], [0, 0, 1, 1], [], []>} : vector<8x8xf32>, vector<8x8xf32>, vector<8x8xf32> -> vector<8x8xf32>
      %cst_22 = arith.constant -0.00493371719 : f32
      %66 = vector.broadcast %cst_22 : f32 to vector<8x1xf32>
      %67 = arith.mulf %66, %32 : vector<8x1xf32>
      %68 = math.exp %67 : vector<8x1xf32>
      %69 = vector.extract_strided_slice %24 {offsets = [0, 16], sizes = [8, 8], strides = [1, 1]} : vector<8x32xf32> to vector<8x8xf32>
      %70 = vector.broadcast %68 : vector<8x1xf32> to vector<8x8xf32>
      %71 = arith.mulf %69, %70 : vector<8x8xf32>
      %72 = vector.extract_strided_slice %22 {offsets = [0, 16], sizes = [8, 8], strides = [1, 1]} : vector<8x32xf32> to vector<8x8xf32>
      %73 = tpu.transpose %71, [1, 0] : vector<8x8xf32> -> vector<8x8xf32>
      %cst_23 = arith.constant dense<0.000000e+00> : vector<8x8xf32>
      %74 = tpu.matmul %72, %73, %cst_23 {dimension_numbers = #tpu.dot_dimension_numbers<[1], [0], [0], [1], [0, 0, 1, 1], [], []>} : vector<8x8xf32>, vector<8x8xf32>, vector<8x8xf32> -> vector<8x8xf32>
      %cst_24 = arith.constant 0.000000e+00 : f32
      %75 = vector.broadcast %cst_24 : f32 to vector<8x8xf32>
      %76 = arith.select %39, %74, %75 : vector<8x8xi1>, vector<8x8xf32>
      %77 = vector.extract_strided_slice %26 {offsets = [0, 16], sizes = [8, 8], strides = [1, 1]} : vector<8x32xf32> to vector<8x8xf32>
      %cst_25 = arith.constant dense<0.000000e+00> : vector<8x8xf32>
      %78 = tpu.matmul %76, %77, %cst_25 {dimension_numbers = #tpu.dot_dimension_numbers<[1], [0], [0], [1], [0, 0, 1, 1], [], []>} : vector<8x8xf32>, vector<8x8xf32>, vector<8x8xf32> -> vector<8x8xf32>
      %cst_26 = arith.constant -0.00195503491 : f32
      %79 = vector.broadcast %cst_26 : f32 to vector<8x1xf32>
      %80 = arith.mulf %79, %32 : vector<8x1xf32>
      %81 = math.exp %80 : vector<8x1xf32>
      %82 = vector.extract_strided_slice %24 {offsets = [0, 24], sizes = [8, 8], strides = [1, 1]} : vector<8x32xf32> to vector<8x8xf32>
      %83 = vector.broadcast %81 : vector<8x1xf32> to vector<8x8xf32>
      %84 = arith.mulf %82, %83 : vector<8x8xf32>
      %85 = vector.extract_strided_slice %22 {offsets = [0, 24], sizes = [8, 8], strides = [1, 1]} : vector<8x32xf32> to vector<8x8xf32>
      %86 = tpu.transpose %84, [1, 0] : vector<8x8xf32> -> vector<8x8xf32>
      %cst_27 = arith.constant dense<0.000000e+00> : vector<8x8xf32>
      %87 = tpu.matmul %85, %86, %cst_27 {dimension_numbers = #tpu.dot_dimension_numbers<[1], [0], [0], [1], [0, 0, 1, 1], [], []>} : vector<8x8xf32>, vector<8x8xf32>, vector<8x8xf32> -> vector<8x8xf32>
      %cst_28 = arith.constant 0.000000e+00 : f32
      %88 = vector.broadcast %cst_28 : f32 to vector<8x8xf32>
      %89 = arith.select %39, %87, %88 : vector<8x8xi1>, vector<8x8xf32>
      %90 = vector.extract_strided_slice %26 {offsets = [0, 24], sizes = [8, 8], strides = [1, 1]} : vector<8x32xf32> to vector<8x8xf32>
      %cst_29 = arith.constant dense<0.000000e+00> : vector<8x8xf32>
      %91 = tpu.matmul %89, %90, %cst_29 {dimension_numbers = #tpu.dot_dimension_numbers<[1], [0], [0], [1], [0, 0, 1, 1], [], []>} : vector<8x8xf32>, vector<8x8xf32>, vector<8x8xf32> -> vector<8x8xf32>
      %c0_30 = arith.constant 0 : index
      %c0_31 = arith.constant 0 : index
      %92 = vector.load %arg13[%c0_30, %c0_31] : memref<8x32xf32, #tpu.memory_space<vmem>>, vector<8x32xf32>
      %93 = tpu.concatenate %52, %65, %78, %91 in 1 : vector<8x8xf32>, vector<8x8xf32>, vector<8x8xf32>, vector<8x8xf32> -> vector<8x32xf32>
      %94 = arith.addf %92, %93 : vector<8x32xf32>
      %c0_32 = arith.constant 0 : index
      %c0_33 = arith.constant 0 : index
      %95 = vector.load %arg13[%c0_32, %c0_33] : memref<8x32xf32, #tpu.memory_space<vmem>>, vector<8x32xf32>
      tpu.vector_store %arg13[%c0_32, %c0_33], %94 {strides = array<i32>} : memref<8x32xf32, #tpu.memory_space<vmem>>, vector<8x32xf32>,
    } else {
    }
    %true = arith.constant true
    %14 = arith.xori %11, %true : i1
    %15 = arith.extui %14 : i1 to i32
    %c0_i32_4 = arith.constant 0 : i32
    %16 = arith.cmpi ne, %15, %c0_i32_4 : i32
    scf.if %16 {
      %c0 = arith.constant 0 : index
      %c0_8 = arith.constant 0 : index
      %22 = vector.load %arg14[%c0, %c0_8] : memref<8x32xf32, #tpu.memory_space<vmem>>, vector<8x32xf32>
      %c0_9 = arith.constant 0 : index
      %c0_10 = arith.constant 0 : index
      %c0_11 = arith.constant 0 : index
      %23 = vector.load %arg6[%c0_9, %c0_10, %c0_11] : memref<1x8x32xf32, #tpu.memory_space<vmem>>, vector<1x8x32xf32>
      %24 = vector.shape_cast %23 : vector<1x8x32xf32> to vector<8x32xf32>
      %c0_12 = arith.constant 0 : index
      %c0_13 = arith.constant 0 : index
      %c0_14 = arith.constant 0 : index
      %25 = vector.load %arg7[%c0_12, %c0_13, %c0_14] : memref<1x8x32xf32, #tpu.memory_space<vmem>>, vector<1x8x32xf32>
      %26 = vector.shape_cast %25 : vector<1x8x32xf32> to vector<8x32xf32>
      %27 = tpu.iota {dimensions = array<i32: 0>} : vector<8x1xi32>
      %28 = arith.subi %4, %5 : i32
      %29 = arith.sitofp %28 : i32 to f32
      %30 = arith.sitofp %27 : vector<8x1xi32> to vector<8x1xf32>
      %31 = vector.broadcast %29 : f32 to vector<8x1xf32>
      %32 = arith.subf %31, %30 : vector<8x1xf32>
      %cst = arith.constant -0.0317486972 : f32
      %33 = vector.broadcast %cst : f32 to vector<8x1xf32>
      %34 = arith.mulf %33, %32 : vector<8x1xf32>
      %35 = math.exp %34 : vector<8x1xf32>
      %36 = vector.extract_strided_slice %24 {offsets = [0, 0], sizes = [8, 8], strides = [1, 1]} : vector<8x32xf32> to vector<8x8xf32>
      %37 = vector.broadcast %35 : vector<8x1xf32> to vector<8x8xf32>
      %38 = arith.mulf %36, %37 : vector<8x8xf32>
      %39 = vector.extract_strided_slice %22 {offsets = [0, 0], sizes = [8, 8], strides = [1, 1]} : vector<8x32xf32> to vector<8x8xf32>
      %40 = tpu.transpose %38, [1, 0] : vector<8x8xf32> -> vector<8x8xf32>
      %cst_15 = arith.constant dense<0.000000e+00> : vector<8x8xf32>
      %41 = tpu.matmul %39, %40, %cst_15 {dimension_numbers = #tpu.dot_dimension_numbers<[1], [0], [0], [1], [0, 0, 1, 1], [], []>} : vector<8x8xf32>, vector<8x8xf32>, vector<8x8xf32> -> vector<8x8xf32>
      %42 = vector.extract_strided_slice %26 {offsets = [0, 0], sizes = [8, 8], strides = [1, 1]} : vector<8x32xf32> to vector<8x8xf32>
      %cst_16 = arith.constant dense<0.000000e+00> : vector<8x8xf32>
      %43 = tpu.matmul %41, %42, %cst_16 {dimension_numbers = #tpu.dot_dimension_numbers<[1], [0], [0], [1], [0, 0, 1, 1], [], []>} : vector<8x8xf32>, vector<8x8xf32>, vector<8x8xf32> -> vector<8x8xf32>
      %cst_17 = arith.constant -0.0124791116 : f32
      %44 = vector.broadcast %cst_17 : f32 to vector<8x1xf32>
      %45 = arith.mulf %44, %32 : vector<8x1xf32>
      %46 = math.exp %45 : vector<8x1xf32>
      %47 = vector.extract_strided_slice %24 {offsets = [0, 8], sizes = [8, 8], strides = [1, 1]} : vector<8x32xf32> to vector<8x8xf32>
      %48 = vector.broadcast %46 : vector<8x1xf32> to vector<8x8xf32>
      %49 = arith.mulf %47, %48 : vector<8x8xf32>
      %50 = vector.extract_strided_slice %22 {offsets = [0, 8], sizes = [8, 8], strides = [1, 1]} : vector<8x32xf32> to vector<8x8xf32>
      %51 = tpu.transpose %49, [1, 0] : vector<8x8xf32> -> vector<8x8xf32>
      %cst_18 = arith.constant dense<0.000000e+00> : vector<8x8xf32>
      %52 = tpu.matmul %50, %51, %cst_18 {dimension_numbers = #tpu.dot_dimension_numbers<[1], [0], [0], [1], [0, 0, 1, 1], [], []>} : vector<8x8xf32>, vector<8x8xf32>, vector<8x8xf32> -> vector<8x8xf32>
      %53 = vector.extract_strided_slice %26 {offsets = [0, 8], sizes = [8, 8], strides = [1, 1]} : vector<8x32xf32> to vector<8x8xf32>
      %cst_19 = arith.constant dense<0.000000e+00> : vector<8x8xf32>
      %54 = tpu.matmul %52, %53, %cst_19 {dimension_numbers = #tpu.dot_dimension_numbers<[1], [0], [0], [1], [0, 0, 1, 1], [], []>} : vector<8x8xf32>, vector<8x8xf32>, vector<8x8xf32> -> vector<8x8xf32>
      %cst_20 = arith.constant -0.00493371719 : f32
      %55 = vector.broadcast %cst_20 : f32 to vector<8x1xf32>
      %56 = arith.mulf %55, %32 : vector<8x1xf32>
      %57 = math.exp %56 : vector<8x1xf32>
      %58 = vector.extract_strided_slice %24 {offsets = [0, 16], sizes = [8, 8], strides = [1, 1]} : vector<8x32xf32> to vector<8x8xf32>
      %59 = vector.broadcast %57 : vector<8x1xf32> to vector<8x8xf32>
      %60 = arith.mulf %58, %59 : vector<8x8xf32>
      %61 = vector.extract_strided_slice %22 {offsets = [0, 16], sizes = [8, 8], strides = [1, 1]} : vector<8x32xf32> to vector<8x8xf32>
      %62 = tpu.transpose %60, [1, 0] : vector<8x8xf32> -> vector<8x8xf32>
      %cst_21 = arith.constant dense<0.000000e+00> : vector<8x8xf32>
      %63 = tpu.matmul %61, %62, %cst_21 {dimension_numbers = #tpu.dot_dimension_numbers<[1], [0], [0], [1], [0, 0, 1, 1], [], []>} : vector<8x8xf32>, vector<8x8xf32>, vector<8x8xf32> -> vector<8x8xf32>
      %64 = vector.extract_strided_slice %26 {offsets = [0, 16], sizes = [8, 8], strides = [1, 1]} : vector<8x32xf32> to vector<8x8xf32>
      %cst_22 = arith.constant dense<0.000000e+00> : vector<8x8xf32>
      %65 = tpu.matmul %63, %64, %cst_22 {dimension_numbers = #tpu.dot_dimension_numbers<[1], [0], [0], [1], [0, 0, 1, 1], [], []>} : vector<8x8xf32>, vector<8x8xf32>, vector<8x8xf32> -> vector<8x8xf32>
      %cst_23 = arith.constant -0.00195503491 : f32
      %66 = vector.broadcast %cst_23 : f32 to vector<8x1xf32>
      %67 = arith.mulf %66, %32 : vector<8x1xf32>
      %68 = math.exp %67 : vector<8x1xf32>
      %69 = vector.extract_strided_slice %24 {offsets = [0, 24], sizes = [8, 8], strides = [1, 1]} : vector<8x32xf32> to vector<8x8xf32>
      %70 = vector.broadcast %68 : vector<8x1xf32> to vector<8x8xf32>
      %71 = arith.mulf %69, %70 : vector<8x8xf32>
      %72 = vector.extract_strided_slice %22 {offsets = [0, 24], sizes = [8, 8], strides = [1, 1]} : vector<8x32xf32> to vector<8x8xf32>
      %73 = tpu.transpose %71, [1, 0] : vector<8x8xf32> -> vector<8x8xf32>
      %cst_24 = arith.constant dense<0.000000e+00> : vector<8x8xf32>
      %74 = tpu.matmul %72, %73, %cst_24 {dimension_numbers = #tpu.dot_dimension_numbers<[1], [0], [0], [1], [0, 0, 1, 1], [], []>} : vector<8x8xf32>, vector<8x8xf32>, vector<8x8xf32> -> vector<8x8xf32>
      %75 = vector.extract_strided_slice %26 {offsets = [0, 24], sizes = [8, 8], strides = [1, 1]} : vector<8x32xf32> to vector<8x8xf32>
      %cst_25 = arith.constant dense<0.000000e+00> : vector<8x8xf32>
      %76 = tpu.matmul %74, %75, %cst_25 {dimension_numbers = #tpu.dot_dimension_numbers<[1], [0], [0], [1], [0, 0, 1, 1], [], []>} : vector<8x8xf32>, vector<8x8xf32>, vector<8x8xf32> -> vector<8x8xf32>
      %c0_26 = arith.constant 0 : index
      %c0_27 = arith.constant 0 : index
      %77 = vector.load %arg13[%c0_26, %c0_27] : memref<8x32xf32, #tpu.memory_space<vmem>>, vector<8x32xf32>
      %78 = tpu.concatenate %43, %54, %65, %76 in 1 : vector<8x8xf32>, vector<8x8xf32>, vector<8x8xf32>, vector<8x8xf32> -> vector<8x32xf32>
      %79 = arith.addf %77, %78 : vector<8x32xf32>
      %c0_28 = arith.constant 0 : index
      %c0_29 = arith.constant 0 : index
      %80 = vector.load %arg13[%c0_28, %c0_29] : memref<8x32xf32, #tpu.memory_space<vmem>>, vector<8x32xf32>
      tpu.vector_store %arg13[%c0_28, %c0_29], %79 {strides = array<i32>} : memref<8x32xf32, #tpu.memory_space<vmem>>, vector<8x32xf32>,
    } else {
    }
    %c8_i32_5 = arith.constant 8 : i32
    %17 = arith.addi %5, %c8_i32_5 : i32
    %c8_i32_6 = arith.constant 8 : i32
    %18 = arith.addi %4, %c8_i32_6 : i32
    %19 = arith.cmpi sge, %17, %18 : i32
    %20 = arith.extui %19 : i1 to i32
    %c0_i32_7 = arith.constant 0 : i32
    %21 = arith.cmpi ne, %20, %c0_i32_7 : i32
    scf.if %21 {
      %c0 = arith.constant 0 : index
      %c0_8 = arith.constant 0 : index
      %22 = vector.load %arg13[%c0, %c0_8] : memref<8x32xf32, #tpu.memory_space<vmem>>, vector<8x32xf32>
      %23 = vector.extract_strided_slice %22 {offsets = [0, 0], sizes = [8, 8], strides = [1, 1]} : vector<8x32xf32> to vector<8x8xf32>
      %cst = arith.constant dense<0.000000e+00> : vector<8xf32>
      %24 = vector.multi_reduction <add>, %23, %cst [1] : vector<8x8xf32> to vector<8xf32>
      %25 = vector.shape_cast %24 : vector<8xf32> to vector<8x1xf32>
      %cst_9 = arith.constant 8.000000e+00 : f32
      %26 = vector.broadcast %cst_9 : f32 to vector<8x1xf32>
      %27 = arith.divf %25, %26 : vector<8x1xf32>
      %28 = vector.broadcast %27 : vector<8x1xf32> to vector<8x8xf32>
      %29 = arith.subf %23, %28 : vector<8x8xf32>
      %30 = arith.mulf %29, %29 : vector<8x8xf32>
      %cst_10 = arith.constant dense<0.000000e+00> : vector<8xf32>
      %31 = vector.multi_reduction <add>, %30, %cst_10 [1] : vector<8x8xf32> to vector<8xf32>
      %32 = vector.shape_cast %31 : vector<8xf32> to vector<8x1xf32>
      %cst_11 = arith.constant 8.000000e+00 : f32
      %33 = vector.broadcast %cst_11 : f32 to vector<8x1xf32>
      %34 = arith.divf %32, %33 : vector<8x1xf32>
      %35 = vector.broadcast %27 : vector<8x1xf32> to vector<8x8xf32>
      %36 = arith.subf %23, %35 : vector<8x8xf32>
      %cst_12 = arith.constant 9.99999974E-6 : f32
      %37 = vector.broadcast %cst_12 : f32 to vector<8x1xf32>
      %38 = arith.addf %34, %37 : vector<8x1xf32>
      %39 = math.rsqrt %38 : vector<8x1xf32>
      %40 = vector.broadcast %39 : vector<8x1xf32> to vector<8x8xf32>
      %41 = arith.mulf %36, %40 : vector<8x8xf32>
      %42 = vector.extract_strided_slice %22 {offsets = [0, 8], sizes = [8, 8], strides = [1, 1]} : vector<8x32xf32> to vector<8x8xf32>
      %cst_13 = arith.constant dense<0.000000e+00> : vector<8xf32>
      %43 = vector.multi_reduction <add>, %42, %cst_13 [1] : vector<8x8xf32> to vector<8xf32>
      %44 = vector.shape_cast %43 : vector<8xf32> to vector<8x1xf32>
      %cst_14 = arith.constant 8.000000e+00 : f32
      %45 = vector.broadcast %cst_14 : f32 to vector<8x1xf32>
      %46 = arith.divf %44, %45 : vector<8x1xf32>
      %47 = vector.broadcast %46 : vector<8x1xf32> to vector<8x8xf32>
      %48 = arith.subf %42, %47 : vector<8x8xf32>
      %49 = arith.mulf %48, %48 : vector<8x8xf32>
      %cst_15 = arith.constant dense<0.000000e+00> : vector<8xf32>
      %50 = vector.multi_reduction <add>, %49, %cst_15 [1] : vector<8x8xf32> to vector<8xf32>
      %51 = vector.shape_cast %50 : vector<8xf32> to vector<8x1xf32>
      %cst_16 = arith.constant 8.000000e+00 : f32
      %52 = vector.broadcast %cst_16 : f32 to vector<8x1xf32>
      %53 = arith.divf %51, %52 : vector<8x1xf32>
      %54 = vector.broadcast %46 : vector<8x1xf32> to vector<8x8xf32>
      %55 = arith.subf %42, %54 : vector<8x8xf32>
      %cst_17 = arith.constant 9.99999974E-6 : f32
      %56 = vector.broadcast %cst_17 : f32 to vector<8x1xf32>
      %57 = arith.addf %53, %56 : vector<8x1xf32>
      %58 = math.rsqrt %57 : vector<8x1xf32>
      %59 = vector.broadcast %58 : vector<8x1xf32> to vector<8x8xf32>
      %60 = arith.mulf %55, %59 : vector<8x8xf32>
      %61 = vector.extract_strided_slice %22 {offsets = [0, 16], sizes = [8, 8], strides = [1, 1]} : vector<8x32xf32> to vector<8x8xf32>
      %cst_18 = arith.constant dense<0.000000e+00> : vector<8xf32>
      %62 = vector.multi_reduction <add>, %61, %cst_18 [1] : vector<8x8xf32> to vector<8xf32>
      %63 = vector.shape_cast %62 : vector<8xf32> to vector<8x1xf32>
      %cst_19 = arith.constant 8.000000e+00 : f32
      %64 = vector.broadcast %cst_19 : f32 to vector<8x1xf32>
      %65 = arith.divf %63, %64 : vector<8x1xf32>
      %66 = vector.broadcast %65 : vector<8x1xf32> to vector<8x8xf32>
      %67 = arith.subf %61, %66 : vector<8x8xf32>
      %68 = arith.mulf %67, %67 : vector<8x8xf32>
      %cst_20 = arith.constant dense<0.000000e+00> : vector<8xf32>
      %69 = vector.multi_reduction <add>, %68, %cst_20 [1] : vector<8x8xf32> to vector<8xf32>
      %70 = vector.shape_cast %69 : vector<8xf32> to vector<8x1xf32>
      %cst_21 = arith.constant 8.000000e+00 : f32
      %71 = vector.broadcast %cst_21 : f32 to vector<8x1xf32>
      %72 = arith.divf %70, %71 : vector<8x1xf32>
      %73 = vector.broadcast %65 : vector<8x1xf32> to vector<8x8xf32>
      %74 = arith.subf %61, %73 : vector<8x8xf32>
      %cst_22 = arith.constant 9.99999974E-6 : f32
      %75 = vector.broadcast %cst_22 : f32 to vector<8x1xf32>
      %76 = arith.addf %72, %75 : vector<8x1xf32>
      %77 = math.rsqrt %76 : vector<8x1xf32>
      %78 = vector.broadcast %77 : vector<8x1xf32> to vector<8x8xf32>
      %79 = arith.mulf %74, %78 : vector<8x8xf32>
      %80 = vector.extract_strided_slice %22 {offsets = [0, 24], sizes = [8, 8], strides = [1, 1]} : vector<8x32xf32> to vector<8x8xf32>
      %cst_23 = arith.constant dense<0.000000e+00> : vector<8xf32>
      %81 = vector.multi_reduction <add>, %80, %cst_23 [1] : vector<8x8xf32> to vector<8xf32>
      %82 = vector.shape_cast %81 : vector<8xf32> to vector<8x1xf32>
      %cst_24 = arith.constant 8.000000e+00 : f32
      %83 = vector.broadcast %cst_24 : f32 to vector<8x1xf32>
      %84 = arith.divf %82, %83 : vector<8x1xf32>
      %85 = vector.broadcast %84 : vector<8x1xf32> to vector<8x8xf32>
      %86 = arith.subf %80, %85 : vector<8x8xf32>
      %87 = arith.mulf %86, %86 : vector<8x8xf32>
      %cst_25 = arith.constant dense<0.000000e+00> : vector<8xf32>
      %88 = vector.multi_reduction <add>, %87, %cst_25 [1] : vector<8x8xf32> to vector<8xf32>
      %89 = vector.shape_cast %88 : vector<8xf32> to vector<8x1xf32>
      %cst_26 = arith.constant 8.000000e+00 : f32
      %90 = vector.broadcast %cst_26 : f32 to vector<8x1xf32>
      %91 = arith.divf %89, %90 : vector<8x1xf32>
      %92 = vector.broadcast %84 : vector<8x1xf32> to vector<8x8xf32>
      %93 = arith.subf %80, %92 : vector<8x8xf32>
      %cst_27 = arith.constant 9.99999974E-6 : f32
      %94 = vector.broadcast %cst_27 : f32 to vector<8x1xf32>
      %95 = arith.addf %91, %94 : vector<8x1xf32>
      %96 = math.rsqrt %95 : vector<8x1xf32>
      %97 = vector.broadcast %96 : vector<8x1xf32> to vector<8x8xf32>
      %98 = arith.mulf %93, %97 : vector<8x8xf32>
      %99 = tpu.concatenate %41, %60, %79, %98 in 1 : vector<8x8xf32>, vector<8x8xf32>, vector<8x8xf32>, vector<8x8xf32> -> vector<8x32xf32>
      %c0_28 = arith.constant 0 : index
      %c0_29 = arith.constant 0 : index
      %100 = vector.load %arg10[%c0_28, %c0_29] : memref<1x32xf32, #tpu.memory_space<vmem>>, vector<1x32xf32>
      %101 = vector.broadcast %100 : vector<1x32xf32> to vector<8x32xf32>
      %102 = arith.mulf %99, %101 : vector<8x32xf32>
      %c0_30 = arith.constant 0 : index
      %c0_31 = arith.constant 0 : index
      %103 = vector.load %arg11[%c0_30, %c0_31] : memref<1x32xf32, #tpu.memory_space<vmem>>, vector<1x32xf32>
      %104 = vector.broadcast %103 : vector<1x32xf32> to vector<8x32xf32>
      %105 = arith.addf %102, %104 : vector<8x32xf32>
      %c0_32 = arith.constant 0 : index
      %c0_33 = arith.constant 0 : index
      %c0_34 = arith.constant 0 : index
      %106 = vector.load %arg4[%c0_32, %c0_33, %c0_34] : memref<1x8x32xf32, #tpu.memory_space<vmem>>, vector<1x8x32xf32>
      %107 = vector.shape_cast %106 : vector<1x8x32xf32> to vector<8x32xf32>
      %c0_35 = arith.constant 0 : index
      %c0_36 = arith.constant 0 : index
      %108 = vector.load %arg8[%c0_35, %c0_36] : memref<32x32xf32, #tpu.memory_space<vmem>>, vector<32x32xf32>
      %cst_37 = arith.constant dense<0.000000e+00> : vector<8x32xf32>
      %109 = tpu.matmul %107, %108, %cst_37 {dimension_numbers = #tpu.dot_dimension_numbers<[1], [0], [0], [1], [0, 0, 1, 1], [], []>} : vector<8x32xf32>, vector<32x32xf32>, vector<8x32xf32> -> vector<8x32xf32>
      %110 = arith.negf %109 : vector<8x32xf32>
      %111 = math.exp %110 : vector<8x32xf32>
      %cst_38 = arith.constant 1.000000e+00 : f32
      %112 = vector.broadcast %cst_38 : f32 to vector<8x32xf32>
      %113 = arith.addf %112, %111 : vector<8x32xf32>
      %114 = arith.divf %112, %113 : vector<8x32xf32>
      %115 = arith.mulf %109, %114 : vector<8x32xf32>
      %116 = arith.mulf %115, %105 : vector<8x32xf32>
      %c0_39 = arith.constant 0 : index
      %c0_40 = arith.constant 0 : index
      %117 = vector.load %arg9[%c0_39, %c0_40] : memref<32x32xf32, #tpu.memory_space<vmem>>, vector<32x32xf32>
      %cst_41 = arith.constant dense<0.000000e+00> : vector<8x32xf32>
      %118 = tpu.matmul %116, %117, %cst_41 {dimension_numbers = #tpu.dot_dimension_numbers<[1], [0], [0], [1], [0, 0, 1, 1], [], []>} : vector<8x32xf32>, vector<32x32xf32>, vector<8x32xf32> -> vector<8x32xf32>
      %c0_42 = arith.constant 0 : index
      %c0_43 = arith.constant 0 : index
      %c0_44 = arith.constant 0 : index
      %119 = vector.load %arg12[%c0_42, %c0_43, %c0_44] : memref<1x8x32xf32, #tpu.memory_space<vmem>>, vector<1x8x32xf32>
      %120 = vector.shape_cast %119 : vector<1x8x32xf32> to vector<8x32xf32>
      %121 = vector.shape_cast %118 : vector<8x32xf32> to vector<1x8x32xf32>
      tpu.vector_store %arg12[%c0_42, %c0_43, %c0_44], %121 {strides = array<i32>} : memref<1x8x32xf32, #tpu.memory_space<vmem>>, vector<1x8x32xf32>,
    } else {
    }
    return
  }
  func.func @transform_0(%arg0: i32, %arg1: i32, %arg2: memref<3xi32, #tpu.memory_space<smem>>, %arg3: memref<3xi32, #tpu.memory_space<smem>>) -> (i32, i32, i32) {
    %0 = arith.index_cast %arg1 : i32 to index
    %1 = memref.load %arg2[%0] : memref<3xi32, #tpu.memory_space<smem>>
    %c0_i32 = arith.constant 0 : i32
    %c0_i32_0 = arith.constant 0 : i32
    return %arg0, %1, %c0_i32 : i32, i32, i32
  }
  func.func @transform_1(%arg0: i32, %arg1: i32, %arg2: memref<3xi32, #tpu.memory_space<smem>>, %arg3: memref<3xi32, #tpu.memory_space<smem>>) -> (i32, i32, i32) {
    %0 = arith.index_cast %arg1 : i32 to index
    %1 = memref.load %arg2[%0] : memref<3xi32, #tpu.memory_space<smem>>
    %c0_i32 = arith.constant 0 : i32
    %c0_i32_0 = arith.constant 0 : i32
    return %arg0, %1, %c0_i32 : i32, i32, i32
  }
  func.func @transform_2(%arg0: i32, %arg1: i32, %arg2: memref<3xi32, #tpu.memory_space<smem>>, %arg3: memref<3xi32, #tpu.memory_space<smem>>) -> (i32, i32, i32) {
    %0 = arith.index_cast %arg1 : i32 to index
    %1 = memref.load %arg3[%0] : memref<3xi32, #tpu.memory_space<smem>>
    %c0_i32 = arith.constant 0 : i32
    %c0_i32_0 = arith.constant 0 : i32
    return %arg0, %1, %c0_i32 : i32, i32, i32
  }
  func.func @transform_3(%arg0: i32, %arg1: i32, %arg2: memref<3xi32, #tpu.memory_space<smem>>, %arg3: memref<3xi32, #tpu.memory_space<smem>>) -> (i32, i32, i32) {
    %0 = arith.index_cast %arg1 : i32 to index
    %1 = memref.load %arg3[%0] : memref<3xi32, #tpu.memory_space<smem>>
    %c0_i32 = arith.constant 0 : i32
    %c0_i32_0 = arith.constant 0 : i32
    return %arg0, %1, %c0_i32 : i32, i32, i32
  }
  func.func @transform_4(%arg0: i32, %arg1: i32, %arg2: memref<3xi32, #tpu.memory_space<smem>>, %arg3: memref<3xi32, #tpu.memory_space<smem>>) -> (i32, i32) {
    %c0_i32 = arith.constant 0 : i32
    %c0_i32_0 = arith.constant 0 : i32
    %c0_i32_1 = arith.constant 0 : i32
    return %c0_i32, %c0_i32_0 : i32, i32
  }
  func.func @transform_5(%arg0: i32, %arg1: i32, %arg2: memref<3xi32, #tpu.memory_space<smem>>, %arg3: memref<3xi32, #tpu.memory_space<smem>>) -> (i32, i32) {
    %c0_i32 = arith.constant 0 : i32
    %c0_i32_0 = arith.constant 0 : i32
    %c0_i32_1 = arith.constant 0 : i32
    return %c0_i32, %c0_i32_0 : i32, i32
  }
  func.func @transform_6(%arg0: i32, %arg1: i32, %arg2: memref<3xi32, #tpu.memory_space<smem>>, %arg3: memref<3xi32, #tpu.memory_space<smem>>) -> (i32, i32) {
    %c0_i32 = arith.constant 0 : i32
    %c0_i32_0 = arith.constant 0 : i32
    %c0_i32_1 = arith.constant 0 : i32
    return %c0_i32, %c0_i32_0 : i32, i32
  }
  func.func @transform_7(%arg0: i32, %arg1: i32, %arg2: memref<3xi32, #tpu.memory_space<smem>>, %arg3: memref<3xi32, #tpu.memory_space<smem>>) -> (i32, i32) {
    %c0_i32 = arith.constant 0 : i32
    %c0_i32_0 = arith.constant 0 : i32
    %c0_i32_1 = arith.constant 0 : i32
    return %c0_i32, %c0_i32_0 : i32, i32
  }
  func.func @transform_8(%arg0: i32, %arg1: i32, %arg2: memref<3xi32, #tpu.memory_space<smem>>, %arg3: memref<3xi32, #tpu.memory_space<smem>>) -> (i32, i32, i32) {
    %0 = arith.index_cast %arg1 : i32 to index
    %1 = memref.load %arg2[%0] : memref<3xi32, #tpu.memory_space<smem>>
    %c0_i32 = arith.constant 0 : i32
    %c0_i32_0 = arith.constant 0 : i32
    return %arg0, %1, %c0_i32 : i32, i32, i32
  }
}

</mosaic_0001>

<llo_original>
// kernel: tpu_custom_call.1
$region0: #{tpu_custom_call.1}
  #allocation0 [shape = 'u32[]', space=smem, size = 0x4, offset = 0x4, fixed_abs, tag = 'smem constant byte address 0x4 - core index']
  #allocation1 [shape = 'u32[144,128]{1,0:T(1,128)}', space=vmem, size = 0x12000, scoped, tag = 'internal scratch']
  #allocation2 [shape = 'f32[8,32]{1,0:T(8,128)}', space=vmem, size = 0x1000, scoped, tag = 'scratch operand']
  #allocation3 [shape = 'f32[8,32]{1,0:T(8,128)}', space=vmem, size = 0x1000, scoped, tag = 'scratch operand']
  #allocation4 [shape = 's32[1]{0}', space=sflag, size = 0x4, scoped, tag = 'scoped memory for tpu_custom_call.1']
  #allocation5 [shape = 'u8[512]{0}', space=smem, size = 0x200, scoped, tag = 'prefetched SMEM operand 0']
  #allocation6 [shape = 'u8[512]{0}', space=smem, size = 0x200, scoped, tag = 'prefetched SMEM operand 1']
  %s0 = inlined_call_operand.hbm [shape: s32[3], index: 0, kind: input, shape index: {}]
  %s1 = inlined_call_operand.vmem [shape: s32[3], index: 1, kind: input, shape index: {}]
  %s2 = inlined_call_operand.hbm [shape: f32[2,16,32], index: 2, kind: input, shape index: {}]
  %s3 = inlined_call_operand.hbm [shape: f32[2,16,32], index: 3, kind: input, shape index: {}]
  %s4 = inlined_call_operand.hbm [shape: f32[2,16,32], index: 4, kind: input, shape index: {}]
  %s5 = inlined_call_operand.hbm [shape: f32[2,16,32], index: 5, kind: input, shape index: {}]
  %s6 = inlined_call_operand.hbm [shape: f32[32,32], index: 6, kind: input, shape index: {}]
  %s7 = inlined_call_operand.hbm [shape: f32[32,32], index: 7, kind: input, shape index: {}]
  %s8 = inlined_call_operand.vmem [shape: f32[1,32], index: 8, kind: input, shape index: {}]
  %s9 = inlined_call_operand.vmem [shape: f32[1,32], index: 9, kind: input, shape index: {}]
  %s10 = inlined_call_operand.hbm [shape: f32[2,16,32], index: 10, kind: output, shape index: {}]
  %s11 = sld [smem:[#allocation0]]
  $region105: #{tpu_custom_call.1} parent=0
    _
  %s13 = ssub.s32 1, %s11
  %s14 = scalar_select 0, %s13, %s11
  %16 = dma.hbm_to_smem %s0, 16, [#allocation5], [#allocation4]
  %s17 = sshll.u32 %s1, 4
  %s18 = int_to_ptr.vmem [resolvable:$true] %s17
  %20 = dma.vmem_to_smem %s18, 16, [#allocation6], [#allocation4]
  %21 = dma.done [#allocation4], 32
  %22 = sfence
  $region1: #{tpu_custom_call.1} parent=0
    #allocation7 [shape = 'u8[8192]{0}', space=vmem, size = 0x2000, scoped, tag = 'input window, operand 2']
    #allocation8 [shape = 's32[2]{0}', space=sflag, size = 0x8, scoped, tag = 'scoped memory for tpu_custom_call.1']
    #allocation9 [shape = 's32[2]{0}', space=sflag, size = 0x8, scoped, tag = 'scoped memory for tpu_custom_call.1']
    #allocation10 [shape = 'u8[8192]{0}', space=vmem, size = 0x2000, scoped, tag = 'input window, operand 3']
    #allocation11 [shape = 's32[2]{0}', space=sflag, size = 0x8, scoped, tag = 'scoped memory for tpu_custom_call.1']
    #allocation12 [shape = 'u8[8192]{0}', space=vmem, size = 0x2000, scoped, tag = 'input window, operand 4']
    #allocation13 [shape = 'u8[8192]{0}', space=vmem, size = 0x2000, scoped, tag = 'input window, operand 5']
    #allocation14 [shape = 's32[2]{0}', space=sflag, size = 0x8, scoped, tag = 'scoped memory for tpu_custom_call.1']
    #allocation15 [shape = 'u8[16384]{0}', space=vmem, size = 0x4000, scoped, tag = 'input window, operand 6, single buffered']
    #allocation16 [shape = 'u8[16384]{0}', space=vmem, size = 0x4000, scoped, tag = 'input window, operand 7, single buffered']
    #allocation17 [shape = 's32[1]{0}', space=sflag, size = 0x4, scoped, tag = 'scoped memory for tpu_custom_call.1']
    #allocation18 [shape = 'u8[8192]{0}', space=vmem, size = 0x2000, scoped, tag = 'output window, operand 0']
    %23 = vsyncpa [#allocation8], 0
    %s24 = scalar_lea.sflag [#allocation8], 1
    %25 = vsyncpa %s24, 0
    %26 = vsyncpa [#allocation11], 0
    %s27 = scalar_lea.sflag [#allocation11], 1
    %28 = vsyncpa %s27, 0
    %29 = vsyncpa [#allocation14], 0
    %s30 = scalar_lea.sflag [#allocation14], 1
    %31 = vsyncpa %s30, 0
    %32 = vsyncpa [#allocation17], 0
    %33 = vsyncpa [#allocation9], 0
    %s34 = scalar_lea.sflag [#allocation9], 1
    %35 = vsyncpa %s34, 0
    loop: start=0, step=1, limit=8
    $region2: #{tpu_custom_call.1} parent=1 // loop_pre_header
      _
    $region3: #{tpu_custom_call.1} parent=1 // loop_header
      %s37 = sphi 0, %s41
      %p38 = scmp.ge.s32.totalorder %s37, 8
      %s44 = sphi 0, %s56
      %s45 = sphi 0, %s52
      %s46 = sphi 0, %s44
      %s47 = sphi 0, %s45
      %s48 = sphi 0, %s46
      %s49 = sphi 0, %s47
      %s63 = sphi 0, %s65
      %s66 = sphi 0, %s63
      %s67 = sphi 0, %s66
      %s83 = sphi 0, %s67
      %s93 = sphi 0, %s95
      %s96 = sphi 0, %s93
      %s97 = sphi 0, %s96
      %s113 = sphi 0, %s97
      %s123 = sphi 0, %s125
      %s126 = sphi 0, %s123
      %s127 = sphi 0, %s126
      %s143 = sphi 0, %s127
      %s153 = sphi 0, %s155
      %s156 = sphi 0, %s153
      %s157 = sphi 0, %s156
      %s173 = sphi 0, %s157
      %s177 = sphi 0, %s177
      %s179 = sphi 0, %s177
      %s180 = sphi 0, %s179
      %s194 = sphi 0, %s180
      %s198 = sphi 0, %s198
      %s200 = sphi 0, %s198
      %s201 = sphi 0, %s200
      %s215 = sphi 0, %s201
      %s219 = sphi 0, %s219
      %s221 = sphi 0, %s219
      %s222 = sphi 0, %s221
      %s236 = sphi 0, %s222
      %s240 = sphi 0, %s240
      %s242 = sphi 0, %s240
      %s243 = sphi 0, %s242
      %s257 = sphi 0, %s243
      %s267 = sphi 0, %s269
      %s270 = sphi 0, %s267
      %s271 = sphi 0, %s270
      %s287 = sphi 0, %s271
    $region4: #{tpu_custom_call.1} parent=1 // loop_header_branch
      %40 = sbr.rel (%p38) target = $region8
    $region5: #{tpu_custom_call.1} parent=1 // loop_body
      %s42 = ssub.s32 %s37, 1
      %s43 = ssub.s32 %s37, 2
      %s50 = sadd.s32 1, %s45
      %p51 = scmp.ge.s32.totalorder %s50, 3
      %s52 = scalar_select %p51, 0, %s50
      %s53 = sadd.s32 1, %s44
      %s54 = scalar_select %p51, %s53, %s44
      %p55 = scmp.ge.s32.totalorder %s54, 2
      %s56 = scalar_select %p55, 0, %s54
      %s57 = sld [smem:[#allocation5 + %s45]]
      %s58 = sld [smem:[#allocation5 + %s52]]
      %s59 = ssub.s32 %s44, %s56
      %s60 = ssub.s32 %s57, %s58
      %s61 = sor.u32 %s59, %s60
      %p62 = scmp.eq.s32.totalorder %s61, 0
      %s64 = sadd.s32 %s63, 1
      %s65 = scalar_select %p62, %s63, %s64
      %p68 = pneg %p62
      %p69 = scmp.eq.s32.totalorder %s37, 5
      %p70 = por %p68, %p69
      %p71 = scmp.ne.s32.totalorder %s63, %s66
      %p72 = scmp.eq.s32.totalorder %s37, 0
      %p73 = por %p71, %p72
      %p74 = scmp.ne.s32.totalorder %s63, %s66
      %p75 = scmp.eq.s32.totalorder %s42, 5
      %p76 = por %p74, %p75
      %p77 = scmp.ne.s32.totalorder %s66, %s67
      %p78 = scmp.eq.s32.totalorder %s42, 0
      %p79 = por %p77, %p78
      %p80 = scmp.ne.s32.totalorder %s66, %s67
      %p81 = scmp.eq.s32.totalorder %s43, 5
      %p82 = por %p80, %p81
      %p84 = scmp.ne.s32.totalorder %s67, %s83
      %p85 = scmp.eq.s32.totalorder %s43, 0
      %p86 = por %p84, %p85
      %s87 = sld [smem:[#allocation5 + %s45]]
      %s88 = sld [smem:[#allocation5 + %s52]]
      %s89 = ssub.s32 %s44, %s56
      %s90 = ssub.s32 %s87, %s88
      %s91 = sor.u32 %s89, %s90
      %p92 = scmp.eq.s32.totalorder %s91, 0
      %s94 = sadd.s32 %s93, 1
      %s95 = scalar_select %p92, %s93, %s94
      %p98 = pneg %p92
      %p99 = scmp.eq.s32.totalorder %s37, 5
      %p100 = por %p98, %p99
      %p101 = scmp.ne.s32.totalorder %s93, %s96
      %p102 = scmp.eq.s32.totalorder %s37, 0
      %p103 = por %p101, %p102
      %p104 = scmp.ne.s32.totalorder %s93, %s96
      %p105 = scmp.eq.s32.totalorder %s42, 5
      %p106 = por %p104, %p105
      %p107 = scmp.ne.s32.totalorder %s96, %s97
      %p108 = scmp.eq.s32.totalorder %s42, 0
      %p109 = por %p107, %p108
      %p110 = scmp.ne.s32.totalorder %s96, %s97
      %p111 = scmp.eq.s32.totalorder %s43, 5
      %p112 = por %p110, %p111
      %p114 = scmp.ne.s32.totalorder %s97, %s113
      %p115 = scmp.eq.s32.totalorder %s43, 0
      %p116 = por %p114, %p115
      %s117 = sld [smem:[#allocation6 + %s45]]
      %s118 = sld [smem:[#allocation6 + %s52]]
      %s119 = ssub.s32 %s44, %s56
      %s120 = ssub.s32 %s117, %s118
      %s121 = sor.u32 %s119, %s120
      %p122 = scmp.eq.s32.totalorder %s121, 0
      %s124 = sadd.s32 %s123, 1
      %s125 = scalar_select %p122, %s123, %s124
      %p128 = pneg %p122
      %p129 = scmp.eq.s32.totalorder %s37, 5
      %p130 = por %p128, %p129
      %p131 = scmp.ne.s32.totalorder %s123, %s126
      %p132 = scmp.eq.s32.totalorder %s37, 0
      %p133 = por %p131, %p132
      %p134 = scmp.ne.s32.totalorder %s123, %s126
      %p135 = scmp.eq.s32.totalorder %s42, 5
      %p136 = por %p134, %p135
      %p137 = scmp.ne.s32.totalorder %s126, %s127
      %p138 = scmp.eq.s32.totalorder %s42, 0
      %p139 = por %p137, %p138
      %p140 = scmp.ne.s32.totalorder %s126, %s127
      %p141 = scmp.eq.s32.totalorder %s43, 5
      %p142 = por %p140, %p141
      %p144 = scmp.ne.s32.totalorder %s127, %s143
      %p145 = scmp.eq.s32.totalorder %s43, 0
      %p146 = por %p144, %p145
      %s147 = sld [smem:[#allocation6 + %s45]]
      %s148 = sld [smem:[#allocation6 + %s52]]
      %s149 = ssub.s32 %s44, %s56
      %s150 = ssub.s32 %s147, %s148
      %s151 = sor.u32 %s149, %s150
      %p152 = scmp.eq.s32.totalorder %s151, 0
      %s154 = sadd.s32 %s153, 1
      %s155 = scalar_select %p152, %s153, %s154
      %p158 = pneg %p152
      %p159 = scmp.eq.s32.totalorder %s37, 5
      %p160 = por %p158, %p159
      %p161 = scmp.ne.s32.totalorder %s153, %s156
      %p162 = scmp.eq.s32.totalorder %s37, 0
      %p163 = por %p161, %p162
      %p164 = scmp.ne.s32.totalorder %s153, %s156
      %p165 = scmp.eq.s32.totalorder %s42, 5
      %p166 = por %p164, %p165
      %p167 = scmp.ne.s32.totalorder %s156, %s157
      %p168 = scmp.eq.s32.totalorder %s42, 0
      %p169 = por %p167, %p168
      %p170 = scmp.ne.s32.totalorder %s156, %s157
      %p171 = scmp.eq.s32.totalorder %s43, 5
      %p172 = por %p170, %p171
      %p174 = scmp.ne.s32.totalorder %s157, %s173
      %p175 = scmp.eq.s32.totalorder %s43, 0
      %p176 = por %p174, %p175
      %s178 = sadd.s32 %s177, 1
      %p181 = scmp.eq.s32.totalorder %s37, 5
      %p182 = scmp.ne.s32.totalorder %s177, %s179
      %p183 = scmp.eq.s32.totalorder %s37, 0
      %p184 = por %p182, %p183
      %p185 = scmp.ne.s32.totalorder %s177, %s179
      %p186 = scmp.eq.s32.totalorder %s42, 5
      %p187 = por %p185, %p186
      %p188 = scmp.ne.s32.totalorder %s179, %s180
      %p189 = scmp.eq.s32.totalorder %s42, 0
      %p190 = por %p188, %p189
      %p191 = scmp.ne.s32.totalorder %s179, %s180
      %p192 = scmp.eq.s32.totalorder %s43, 5
      %p193 = por %p191, %p192
      %p195 = scmp.ne.s32.totalorder %s180, %s194
      %p196 = scmp.eq.s32.totalorder %s43, 0
      %p197 = por %p195, %p196
      %s199 = sadd.s32 %s198, 1
      %p202 = scmp.eq.s32.totalorder %s37, 5
      %p203 = scmp.ne.s32.totalorder %s198, %s200
      %p204 = scmp.eq.s32.totalorder %s37, 0
      %p205 = por %p203, %p204
      %p206 = scmp.ne.s32.totalorder %s198, %s200
      %p207 = scmp.eq.s32.totalorder %s42, 5
      %p208 = por %p206, %p207
      %p209 = scmp.ne.s32.totalorder %s200, %s201
      %p210 = scmp.eq.s32.totalorder %s42, 0
      %p211 = por %p209, %p210
      %p212 = scmp.ne.s32.totalorder %s200, %s201
      %p213 = scmp.eq.s32.totalorder %s43, 5
      %p214 = por %p212, %p213
      %p216 = scmp.ne.s32.totalorder %s201, %s215
      %p217 = scmp.eq.s32.totalorder %s43, 0
      %p218 = por %p216, %p217
      %s220 = sadd.s32 %s219, 1
      %p223 = scmp.eq.s32.totalorder %s37, 5
      %p224 = scmp.ne.s32.totalorder %s219, %s221
      %p225 = scmp.eq.s32.totalorder %s37, 0
      %p226 = por %p224, %p225
      %p227 = scmp.ne.s32.totalorder %s219, %s221
      %p228 = scmp.eq.s32.totalorder %s42, 5
      %p229 = por %p227, %p228
      %p230 = scmp.ne.s32.totalorder %s221, %s222
      %p231 = scmp.eq.s32.totalorder %s42, 0
      %p232 = por %p230, %p231
      %p233 = scmp.ne.s32.totalorder %s221, %s222
      %p234 = scmp.eq.s32.totalorder %s43, 5
      %p235 = por %p233, %p234
      %p237 = scmp.ne.s32.totalorder %s222, %s236
      %p238 = scmp.eq.s32.totalorder %s43, 0
      %p239 = por %p237, %p238
      %s241 = sadd.s32 %s240, 1
      %p244 = scmp.eq.s32.totalorder %s37, 5
      %p245 = scmp.ne.s32.totalorder %s240, %s242
      %p246 = scmp.eq.s32.totalorder %s37, 0
      %p247 = por %p245, %p246
      %p248 = scmp.ne.s32.totalorder %s240, %s242
      %p249 = scmp.eq.s32.totalorder %s42, 5
      %p250 = por %p248, %p249
      %p251 = scmp.ne.s32.totalorder %s242, %s243
      %p252 = scmp.eq.s32.totalorder %s42, 0
      %p253 = por %p251, %p252
      %p254 = scmp.ne.s32.totalorder %s242, %s243
      %p255 = scmp.eq.s32.totalorder %s43, 5
      %p256 = por %p254, %p255
      %p258 = scmp.ne.s32.totalorder %s243, %s257
      %p259 = scmp.eq.s32.totalorder %s43, 0
      %p260 = por %p258, %p259
      %s261 = sld [smem:[#allocation5 + %s45]]
      %s262 = sld [smem:[#allocation5 + %s52]]
      %s263 = ssub.s32 %s44, %s56
      %s264 = ssub.s32 %s261, %s262
      %s265 = sor.u32 %s263, %s264
      %p266 = scmp.eq.s32.totalorder %s265, 0
      %s268 = sadd.s32 %s267, 1
      %s269 = scalar_select %p266, %s267, %s268
      %p272 = pneg %p266
      %p273 = scmp.eq.s32.totalorder %s37, 5
      %p274 = por %p272, %p273
      %p275 = scmp.ne.s32.totalorder %s267, %s270
      %p276 = scmp.eq.s32.totalorder %s37, 0
      %p277 = por %p275, %p276
      %p278 = scmp.ne.s32.totalorder %s267, %s270
      %p279 = scmp.eq.s32.totalorder %s42, 5
      %p280 = por %p278, %p279
      %p281 = scmp.ne.s32.totalorder %s270, %s271
      %p282 = scmp.eq.s32.totalorder %s42, 0
      %p283 = por %p281, %p282
      %p284 = scmp.ne.s32.totalorder %s270, %s271
      %p285 = scmp.eq.s32.totalorder %s43, 5
      %p286 = por %p284, %p285
      %p288 = scmp.ne.s32.totalorder %s271, %s287
      %p289 = scmp.eq.s32.totalorder %s43, 0
      %p290 = por %p288, %p289
      %p291 = scmp.le.s32.totalorder 1, %s37
      %p292 = scmp.lt.s32.totalorder %s37, 7
      %p293 = pnand %p291, %p292
      %p294 = pneg %p293
      // Predicated region
      $region9: #{tpu_custom_call.1} parent=5 // pred_check
        _
      $region10: #{tpu_custom_call.1} parent=5 // pred_check_branch
        %296 = sbr.rel (%p293) target = $region12
      $region11: #{tpu_custom_call.1} parent=5 // pred_region
        %s297 = ssub.s32 %s37, 1
        // Predicated region
        $region13: #{tpu_custom_call.1} parent=11 // pred_check
          %p298 = pneg %p190
        $region14: #{tpu_custom_call.1} parent=11 // pred_check_branch
          %300 = sbr.rel (%p298) target = $region16
        $region15: #{tpu_custom_call.1} parent=11 // pred_region
          %s302 = ssub.s32 512, 512
          %303 = vsyncadd [#allocation14], %s302
          %s304 = sshll.u32 [#allocation15], 4
          %s305 = int_to_ptr.vmem [resolvable:$true] %s304
          %310 = dma.hbm_to_vmem [thread:$0]  %s6, 512, %s305, [#allocation14], 128, 128, 8
        $region16: #{tpu_custom_call.1} parent=11 // pred_fallthru
          _
        // Predicated region
        $region17: #{tpu_custom_call.1} parent=11 // pred_check
          %p311 = pneg %p211
        $region18: #{tpu_custom_call.1} parent=11 // pred_check_branch
          %313 = sbr.rel (%p311) target = $region20
        $region19: #{tpu_custom_call.1} parent=11 // pred_region
          %s315 = ssub.s32 512, 512
          %316 = vsyncadd [#allocation17], %s315
          %s317 = sshll.u32 [#allocation16], 4
          %s318 = int_to_ptr.vmem [resolvable:$true] %s317
          %323 = dma.hbm_to_vmem [thread:$0]  %s7, 512, %s318, [#allocation17], 128, 128, 8
        $region20: #{tpu_custom_call.1} parent=11 // pred_fallthru
          _
        // Predicated region
        $region21: #{tpu_custom_call.1} parent=11 // pred_check
          %p324 = pneg %p232
        $region22: #{tpu_custom_call.1} parent=11 // pred_check_branch
          %326 = sbr.rel (%p324) target = $region24
        $region23: #{tpu_custom_call.1} parent=11 // pred_region
          _
        $region24: #{tpu_custom_call.1} parent=11 // pred_fallthru
          _
        // Predicated region
        $region25: #{tpu_custom_call.1} parent=11 // pred_check
          %p327 = pneg %p253
        $region26: #{tpu_custom_call.1} parent=11 // pred_check_branch
          %329 = sbr.rel (%p327) target = $region28
        $region27: #{tpu_custom_call.1} parent=11 // pred_region
          _
        $region28: #{tpu_custom_call.1} parent=11 // pred_fallthru
          _
      $region12: #{tpu_custom_call.1} parent=5 // pred_fallthru
        _
      %p330 = scmp.lt.s32.totalorder %s37, 6
      // Predicated region
      $region29: #{tpu_custom_call.1} parent=5 // pred_check
        %p331 = pneg %p330
      $region30: #{tpu_custom_call.1} parent=5 // pred_check_branch
        %333 = sbr.rel (%p331) target = $region32
      $region31: #{tpu_custom_call.1} parent=5 // pred_region
        // Predicated region
        $region33: #{tpu_custom_call.1} parent=31 // pred_check
          %p334 = pneg %p73
        $region34: #{tpu_custom_call.1} parent=31 // pred_check_branch
          %336 = sbr.rel (%p334) target = $region36
        $region35: #{tpu_custom_call.1} parent=31 // pred_region
          %s337 = sand.u32 %s63, 1
          %s338 = scalar_lea.sflag [#allocation8], %s337
          %s339 = sand.u32 %s63, 1
          %s340 = smul.addr %s339, 8
          %s341 = scalar_lea.vmem [#allocation7], %s340
          %s342 = sld [smem:[#allocation5 + %s45]]
          %s344 = ssub.s32 128, 128
          %345 = vsyncadd %s338, %s344
          %s346 = smul.addr %s44, 2
          %s347 = sadd.s32 %s342, %s346
          %s348 = smul.addr %s347, 128
          %s349 = scalar_lea.hbm %s2, %s348
          %s351 = sshll.u32 %s341, 4
          %s352 = int_to_ptr.vmem [resolvable:$true] %s351
          %354 = dma.hbm_to_vmem [thread:$0]  %s349, 128, %s352, %s338
        $region36: #{tpu_custom_call.1} parent=31 // pred_fallthru
          _
        // Predicated region
        $region37: #{tpu_custom_call.1} parent=31 // pred_check
          %p355 = pneg %p103
        $region38: #{tpu_custom_call.1} parent=31 // pred_check_branch
          %357 = sbr.rel (%p355) target = $region40
        $region39: #{tpu_custom_call.1} parent=31 // pred_region
          %s358 = sand.u32 %s37, 1
          %s359 = scalar_lea.sflag [#allocation11], %s358
          %s360 = sand.u32 %s93, 1
          %s361 = smul.addr %s360, 8
          %s362 = scalar_lea.vmem [#allocation10], %s361
          %s363 = sld [smem:[#allocation5 + %s45]]
          %s365 = ssub.s32 128, 128
          %366 = vsyncadd %s359, %s365
          %s367 = smul.addr %s44, 2
          %s368 = sadd.s32 %s363, %s367
          %s369 = smul.addr %s368, 128
          %s370 = scalar_lea.hbm %s3, %s369
          %s372 = sshll.u32 %s362, 4
          %s373 = int_to_ptr.vmem [resolvable:$true] %s372
          %375 = dma.hbm_to_vmem [thread:$0]  %s370, 128, %s373, %s359
        $region40: #{tpu_custom_call.1} parent=31 // pred_fallthru
          _
        // Predicated region
        $region41: #{tpu_custom_call.1} parent=31 // pred_check
          %p376 = pneg %p133
        $region42: #{tpu_custom_call.1} parent=31 // pred_check_branch
          %378 = sbr.rel (%p376) target = $region44
        $region43: #{tpu_custom_call.1} parent=31 // pred_region
          %s379 = sand.u32 %s37, 1
          %s380 = scalar_lea.sflag [#allocation11], %s379
          %s381 = sand.u32 %s123, 1
          %s382 = smul.addr %s381, 8
          %s383 = scalar_lea.vmem [#allocation12], %s382
          %s384 = sld [smem:[#allocation6 + %s45]]
          %s386 = ssub.s32 128, 128
          %387 = vsyncadd %s380, %s386
          %s388 = smul.addr %s44, 2
          %s389 = sadd.s32 %s384, %s388
          %s390 = smul.addr %s389, 128
          %s391 = scalar_lea.hbm %s4, %s390
          %s393 = sshll.u32 %s383, 4
          %s394 = int_to_ptr.vmem [resolvable:$true] %s393
          %396 = dma.hbm_to_vmem [thread:$0]  %s391, 128, %s394, %s380
        $region44: #{tpu_custom_call.1} parent=31 // pred_fallthru
          _
        // Predicated region
        $region45: #{tpu_custom_call.1} parent=31 // pred_check
          %p397 = pneg %p163
        $region46: #{tpu_custom_call.1} parent=31 // pred_check_branch
          %399 = sbr.rel (%p397) target = $region48
        $region47: #{tpu_custom_call.1} parent=31 // pred_region
          %s400 = sand.u32 %s37, 1
          %s401 = scalar_lea.sflag [#allocation14], %s400
          %s402 = sand.u32 %s153, 1
          %s403 = smul.addr %s402, 8
          %s404 = scalar_lea.vmem [#allocation13], %s403
          %s405 = sld [smem:[#allocation6 + %s45]]
          %s407 = ssub.s32 128, 128
          %408 = vsyncadd %s401, %s407
          %s409 = smul.addr %s44, 2
          %s410 = sadd.s32 %s405, %s409
          %s411 = smul.addr %s410, 128
          %s412 = scalar_lea.hbm %s5, %s411
          %s414 = sshll.u32 %s404, 4
          %s415 = int_to_ptr.vmem [resolvable:$true] %s414
          %417 = dma.hbm_to_vmem [thread:$0]  %s412, 128, %s415, %s401
        $region48: #{tpu_custom_call.1} parent=31 // pred_fallthru
          _
      $region32: #{tpu_custom_call.1} parent=5 // pred_fallthru
        _
      %p418 = scmp.le.s32.totalorder 1, %s37
      %p419 = scmp.lt.s32.totalorder %s37, 7
      %p420 = pnand %p418, %p419
      %p421 = pneg %p420
      // Predicated region
      $region49: #{tpu_custom_call.1} parent=5 // pred_check
        _
      $region50: #{tpu_custom_call.1} parent=5 // pred_check_branch
        %423 = sbr.rel (%p420) target = $region52
      $region51: #{tpu_custom_call.1} parent=5 // pred_region
        %s424 = ssub.s32 %s37, 1
        %s425 = sand.u32 %s66, 1
        %s426 = scalar_lea.sflag [#allocation8], %s425
        %s427 = sand.u32 %s66, 1
        %s428 = smul.addr %s427, 8
        %s429 = scalar_lea.vmem [#allocation7], %s428
        // Predicated region
        $region53: #{tpu_custom_call.1} parent=51 // pred_check
          %p430 = pneg %p79
        $region54: #{tpu_custom_call.1} parent=51 // pred_check_branch
          %432 = sbr.rel (%p430) target = $region56
        $region55: #{tpu_custom_call.1} parent=51 // pred_region
          %433 = dma.done %s426, 128
        $region56: #{tpu_custom_call.1} parent=51 // pred_fallthru
          _
        %s434 = sand.u32 %s42, 1
        %s435 = scalar_lea.sflag [#allocation11], %s434
        %s436 = sand.u32 %s96, 1
        %s437 = smul.addr %s436, 8
        %s438 = scalar_lea.vmem [#allocation10], %s437
        // Predicated region
        $region57: #{tpu_custom_call.1} parent=51 // pred_check
          %p439 = pneg %p109
        $region58: #{tpu_custom_call.1} parent=51 // pred_check_branch
          %441 = sbr.rel (%p439) target = $region60
        $region59: #{tpu_custom_call.1} parent=51 // pred_region
          %442 = dma.done %s435, 128
        $region60: #{tpu_custom_call.1} parent=51 // pred_fallthru
          _
        %s443 = sand.u32 %s42, 1
        %s444 = scalar_lea.sflag [#allocation11], %s443
        %s445 = sand.u32 %s126, 1
        %s446 = smul.addr %s445, 8
        %s447 = scalar_lea.vmem [#allocation12], %s446
        // Predicated region
        $region61: #{tpu_custom_call.1} parent=51 // pred_check
          %p448 = pneg %p139
        $region62: #{tpu_custom_call.1} parent=51 // pred_check_branch
          %450 = sbr.rel (%p448) target = $region64
        $region63: #{tpu_custom_call.1} parent=51 // pred_region
          %451 = dma.done %s444, 128
        $region64: #{tpu_custom_call.1} parent=51 // pred_fallthru
          _
        %s452 = sand.u32 %s42, 1
        %s453 = scalar_lea.sflag [#allocation14], %s452
        %s454 = sand.u32 %s156, 1
        %s455 = smul.addr %s454, 8
        %s456 = scalar_lea.vmem [#allocation13], %s455
        // Predicated region
        $region65: #{tpu_custom_call.1} parent=51 // pred_check
          %p457 = pneg %p169
        $region66: #{tpu_custom_call.1} parent=51 // pred_check_branch
          %459 = sbr.rel (%p457) target = $region68
        $region67: #{tpu_custom_call.1} parent=51 // pred_region
          %460 = dma.done %s453, 128
        $region68: #{tpu_custom_call.1} parent=51 // pred_fallthru
          _
        // Predicated region
        $region69: #{tpu_custom_call.1} parent=51 // pred_check
          %p461 = pneg %p190
        $region70: #{tpu_custom_call.1} parent=51 // pred_check_branch
          %463 = sbr.rel (%p461) target = $region72
        $region71: #{tpu_custom_call.1} parent=51 // pred_region
          %464 = dma.done [#allocation14], 512
        $region72: #{tpu_custom_call.1} parent=51 // pred_fallthru
          _
        // Predicated region
        $region73: #{tpu_custom_call.1} parent=51 // pred_check
          %p465 = pneg %p211
        $region74: #{tpu_custom_call.1} parent=51 // pred_check_branch
          %467 = sbr.rel (%p465) target = $region76
        $region75: #{tpu_custom_call.1} parent=51 // pred_region
          %468 = dma.done [#allocation17], 512
        $region76: #{tpu_custom_call.1} parent=51 // pred_fallthru
          _
        %s469 = sand.u32 %s66, 1
        %s470 = scalar_lea.sflag [#allocation8], %s469
        %s471 = sand.u32 %s66, 1
        %s472 = smul.addr %s471, 8
        %s473 = scalar_lea.vmem [#allocation7], %s472
        %p474 = pneg %p79
        %p475 = pneg %p76
        %s476 = sand.u32 %s42, 1
        %s477 = scalar_lea.sflag [#allocation11], %s476
        %s478 = sand.u32 %s96, 1
        %s479 = smul.addr %s478, 8
        %s480 = scalar_lea.vmem [#allocation10], %s479
        %p481 = pneg %p109
        %p482 = pneg %p106
        %s483 = sand.u32 %s42, 1
        %s484 = scalar_lea.sflag [#allocation11], %s483
        %s485 = sand.u32 %s126, 1
        %s486 = smul.addr %s485, 8
        %s487 = scalar_lea.vmem [#allocation12], %s486
        %p488 = pneg %p139
        %p489 = pneg %p136
        %s490 = sand.u32 %s42, 1
        %s491 = scalar_lea.sflag [#allocation14], %s490
        %s492 = sand.u32 %s156, 1
        %s493 = smul.addr %s492, 8
        %s494 = scalar_lea.vmem [#allocation13], %s493
        %p495 = pneg %p169
        %p496 = pneg %p166
        %p497 = pneg %p190
        %p498 = pneg %p187
        %p499 = pneg %p211
        %p500 = pneg %p208
        %p501 = pneg %p232
        %p502 = pneg %p229
        %p503 = pneg %p253
        %p504 = pneg %p250
        %p505 = pneg %p283
        %p506 = pneg %p280
        %s507 = sand.u32 %s270, 1
        %s508 = scalar_lea.sflag [#allocation9], %s507
        %s509 = sand.u32 %s270, 1
        %s510 = smul.addr %s509, 8
        %s511 = scalar_lea.vmem [#allocation18], %s510
        %s512 = sld [smem:[#allocation5 + %s47]]
        %s513 = sld [smem:[#allocation5 + %s47]]
        %s514 = sld [smem:[#allocation6 + %s47]]
        %s515 = sld [smem:[#allocation6 + %s47]]
        %s516 = sld [smem:[#allocation5 + %s47]]
        %s517 = sld [smem:[#allocation5 + %s47]]
        %s518 = sld [smem:[#allocation6 + %s47]]
        %s519 = smul.u32 %s517, 8
        %s520 = smul.u32 %s518, 8
        %p521 = scmp.eq.s32.totalorder %s518, 0
        // Predicated region
        $region77: #{tpu_custom_call.1} parent=51 // pred_check
          %p522 = pneg %p521
        $region78: #{tpu_custom_call.1} parent=51 // pred_check_branch
          %524 = sbr.rel (%p522) target = $region80
        $region79: #{tpu_custom_call.1} parent=51 // pred_region
          %vm525 = vcmask 261120
          %526 = vst.msk [vmem:[#allocation2] sm:$0xff] %vm525, 0.0
          %v527 = vlaneseq
          %v528 = vshrl.u32 %v527, 7
          %v529 = vcvt.s32.f32 %v528
          %v530 = vld [vmem:[%s438] sm:$0xff]
          %v531 = vmul.f32 %v529, -0.031748697
          %v532 = vmul.f32 %v531, 1.442695
          %v533 = vpow.pop %v532
          %v534 = vmul.f32 %v530, %v533
          %v535 = vmul.f32 %v529, -0.012479112
          %v536 = vmul.f32 %v535, 1.442695
          %v537 = vpow.pop %v536
          %v538 = vmul.f32 %v530, %v537
          %v539 = vmul.f32 %v529, -0.004933717
          %v540 = vmul.f32 %v539, 1.442695
          %v541 = vpow.pop %v540
          %v542 = vmul.f32 %v530, %v541
          %v543 = vmul.f32 %v529, -0.001955035
          %v544 = vmul.f32 %v543, 1.442695
          %v545 = vpow.pop %v544
          %v546 = vmul.f32 %v530, %v545
          %vm547 = vcmask 64512
          %v548 = vsel %vm547, %v534, %v538
          %vm549 = vcmask 130048
          %v550 = vsel %vm549, %v548, %v542
          %vm551 = vcmask 195584
          %v552 = vsel %vm551, %v550, %v546
          %553 = vst.msk [vmem:[#allocation3] sm:$0xff] %vm525, %v552
        $region80: #{tpu_custom_call.1} parent=51 // pred_fallthru
          _
        %s554 = sadd.s32 %s520, 7
        %p555 = scmp.gt.s32.totalorder %s554, %s519
        // Predicated region
        $region81: #{tpu_custom_call.1} parent=51 // pred_check
          %p556 = pneg %p555
        $region82: #{tpu_custom_call.1} parent=51 // pred_check_branch
          %558 = sbr.rel (%p556) target = $region84
        $region83: #{tpu_custom_call.1} parent=51 // pred_region
          %v559 = vld [vmem:[#allocation3] sm:$0xff]
          %v560 = vld [vmem:[%s447] sm:$0xff]
          %v561 = vld [vmem:[%s456] sm:$0xff]
          %v562 = vlaneseq
          %v563 = vshrl.u32 %v562, 7
          %s564 = ssub.s32 %s519, %s520
          %s565 = scvt.s32.f32 %s564
          %v566 = vcvt.s32.f32 %v563
          %v567 = vstv %s565
          %v568 = vsub.f32 %v567, %v566
          %v569 = vlaneseq
          %v570 = vand.u32 %v569, 127
          %v571 = vstv %s519
          %v572 = vadd.s32 %v563, %v571
          %v573 = vstv %s520
          %v574 = vadd.s32 %v570, %v573
          %vm575 = vcmp.ge.s32.totalorder %v572, %v574
          %v576 = vmul.f32 %v568, -0.031748697
          %v577 = vmul.f32 %v576, 1.442695
          %v578 = vpow.pop %v577
          %v579 = vmul.f32 %v560, %v578
          %vm580 = vcmask 64512
          %v582 = vsel %vm580, %v559, 0
          %v585 = vsel %vm580, %v579, 0
          %587 = vmatprep.subr.mxu0 0.0
          %588 = vmatpush1.xpose.msra.mxu0 0.0
          %589 = vmatprep.subr.mxu0 0.0
          %590 = vmatpush1.xpose.msra.mxu0 0.0
          %591 = vmatprep.subr.mxu0 0.0
          %592 = vmatpush1.xpose.msra.mxu0 0.0
          %593 = vmatprep.subr.mxu0 0.0
          %594 = vmatpush1.xpose.msra.mxu0 0.0
          %595 = vmatprep.subr.mxu0 0.0
          %596 = vmatpush1.xpose.msra.mxu0 0.0
          %597 = vmatprep.subr.mxu0 0.0
          %598 = vmatpush1.xpose.msra.mxu0 0.0
          %599 = vmatprep.subr.mxu0 0.0
          %600 = vmatpush1.xpose.msra.mxu0 0.0
          %601 = vmatprep.subr.mxu0 0.0
          %602 = vmatpush1.xpose.msra.mxu0 0.0
          %603 = vmatprep.subr.mxu0 0.0
          %604 = vmatpush1.xpose.msra.mxu0 0.0
          %605 = vmatprep.subr.mxu0 0.0
          %606 = vmatpush1.xpose.msra.mxu0 0.0
          %607 = vmatprep.subr.mxu0 0.0
          %608 = vmatpush1.xpose.msra.mxu0 0.0
          %609 = vmatprep.subr.mxu0 0.0
          %610 = vmatpush1.xpose.msra.mxu0 0.0
          %611 = vmatprep.subr.mxu0 0.0
          %612 = vmatpush1.xpose.msra.mxu0 0.0
          %613 = vmatprep.subr.mxu0 0.0
          %614 = vmatpush1.xpose.msra.mxu0 0.0
          %615 = vmatprep.subr.mxu0 0.0
          %616 = vmatpush1.xpose.msra.mxu0 0.0
          %617 = vmatprep.subr.mxu0 0.0
          %618 = vmatpush1.xpose.msra.mxu0 %v585
          %619 = vmatprep.subr.mxu0 0.0
          %620 = vmatpush2.xpose.msra.mxu0 0.0
          %621 = vmatprep.subr.mxu0 0.0
          %622 = vmatpush2.xpose.msra.mxu0 0.0
          %623 = vmatprep.subr.mxu0 0.0
          %624 = vmatpush2.xpose.msra.mxu0 0.0
          %625 = vmatprep.subr.mxu0 0.0
          %626 = vmatpush2.xpose.msra.mxu0 0.0
          %627 = vmatprep.subr.mxu0 0.0
          %628 = vmatpush2.xpose.msra.mxu0 0.0
          %629 = vmatprep.subr.mxu0 0.0
          %630 = vmatpush2.xpose.msra.mxu0 0.0
          %631 = vmatprep.subr.mxu0 0.0
          %632 = vmatpush2.xpose.msra.mxu0 0.0
          %633 = vmatprep.subr.mxu0 0.0
          %634 = vmatpush2.xpose.msra.mxu0 0.0
          %635 = vmatprep.subr.mxu0 0.0
          %636 = vmatpush2.xpose.msra.mxu0 0.0
          %637 = vmatprep.subr.mxu0 0.0
          %638 = vmatpush2.xpose.msra.mxu0 0.0
          %639 = vmatprep.subr.mxu0 0.0
          %640 = vmatpush2.xpose.msra.mxu0 0.0
          %641 = vmatprep.subr.mxu0 0.0
          %642 = vmatpush2.xpose.msra.mxu0 0.0
          %643 = vmatprep.subr.mxu0 0.0
          %644 = vmatpush2.xpose.msra.mxu0 0.0
          %645 = vmatprep.subr.mxu0 0.0
          %646 = vmatpush2.xpose.msra.mxu0 0.0
          %647 = vmatprep.subr.mxu0 0.0
          %648 = vmatpush2.xpose.msra.mxu0 0.0
          %649 = vmatprep.subr.mxu0 0.0
          %650 = vmatpush2.xpose.msra.mxu0 0.0
          %651 = vmatprep.mubr.f32.mxu0 0.0
          %652 = vmatmul.mubr.f32.gmra.mxu0 %v582
          %v653 = vpop.f32.mrf.mxu0
          %v654 = vadd.f32 0.0, %v653
          %v655 = vpop.f32.mrf.mxu0
          %656 = vdwg.mxu0
          %v657 = vsel %vm575, %v654, 0.0
          %v659 = vsel %vm580, %v657, 0
          %661 = vmatprep.subr.mxu0 0.0
          %662 = vmatpush1.msra.mxu0 0.0
          %663 = vmatprep.subr.mxu0 0.0
          %664 = vmatpush1.msra.mxu0 0.0
          %665 = vmatprep.subr.mxu0 0.0
          %666 = vmatpush1.msra.mxu0 0.0
          %667 = vmatprep.subr.mxu0 0.0
          %668 = vmatpush1.msra.mxu0 0.0
          %669 = vmatprep.subr.mxu0 0.0
          %670 = vmatpush1.msra.mxu0 0.0
          %671 = vmatprep.subr.mxu0 0.0
          %672 = vmatpush1.msra.mxu0 0.0
          %673 = vmatprep.subr.mxu0 0.0
          %674 = vmatpush1.msra.mxu0 0.0
          %675 = vmatprep.subr.mxu0 0.0
          %676 = vmatpush1.msra.mxu0 0.0
          %677 = vmatprep.subr.mxu0 0.0
          %678 = vmatpush1.msra.mxu0 0.0
          %679 = vmatprep.subr.mxu0 0.0
          %680 = vmatpush1.msra.mxu0 0.0
          %681 = vmatprep.subr.mxu0 0.0
          %682 = vmatpush1.msra.mxu0 0.0
          %683 = vmatprep.subr.mxu0 0.0
          %684 = vmatpush1.msra.mxu0 0.0
          %685 = vmatprep.subr.mxu0 0.0
          %686 = vmatpush1.msra.mxu0 0.0
          %687 = vmatprep.subr.mxu0 0.0
          %688 = vmatpush1.msra.mxu0 0.0
          %689 = vmatprep.subr.mxu0 0.0
          %690 = vmatpush1.msra.mxu0 0.0
          %691 = vmatprep.subr.mxu0 0.0
          %692 = vmatpush1.msra.mxu0 %v561
          %693 = vmatprep.subr.mxu0 0.0
          %694 = vmatpush2.msra.mxu0 0.0
          %695 = vmatprep.subr.mxu0 0.0
          %696 = vmatpush2.msra.mxu0 0.0
          %697 = vmatprep.subr.mxu0 0.0
          %698 = vmatpush2.msra.mxu0 0.0
          %699 = vmatprep.subr.mxu0 0.0
          %700 = vmatpush2.msra.mxu0 0.0
          %701 = vmatprep.subr.mxu0 0.0
          %702 = vmatpush2.msra.mxu0 0.0
          %703 = vmatprep.subr.mxu0 0.0
          %704 = vmatpush2.msra.mxu0 0.0
          %705 = vmatprep.subr.mxu0 0.0
          %706 = vmatpush2.msra.mxu0 0.0
          %707 = vmatprep.subr.mxu0 0.0
          %708 = vmatpush2.msra.mxu0 0.0
          %709 = vmatprep.subr.mxu0 0.0
          %710 = vmatpush2.msra.mxu0 0.0
          %711 = vmatprep.subr.mxu0 0.0
          %712 = vmatpush2.msra.mxu0 0.0
          %713 = vmatprep.subr.mxu0 0.0
          %714 = vmatpush2.msra.mxu0 0.0
          %715 = vmatprep.subr.mxu0 0.0
          %716 = vmatpush2.msra.mxu0 0.0
          %717 = vmatprep.subr.mxu0 0.0
          %718 = vmatpush2.msra.mxu0 0.0
          %719 = vmatprep.subr.mxu0 0.0
          %720 = vmatpush2.msra.mxu0 0.0
          %721 = vmatprep.subr.mxu0 0.0
          %722 = vmatpush2.msra.mxu0 0.0
          %723 = vmatprep.subr.mxu0 0.0
          %724 = vmatpush2.msra.mxu0 0.0
          %725 = vmatprep.mubr.f32.mxu0 0.0
          %726 = vmatmul.mubr.f32.gmra.mxu0 %v659
          %v727 = vpop.f32.mrf.mxu0
          %v728 = vadd.f32 0.0, %v727
          %v729 = vpop.f32.mrf.mxu0
          %730 = vdwg.mxu0
          %v731 = vmul.f32 %v568, -0.012479112
          %v732 = vmul.f32 %v731, 1.442695
          %v733 = vpow.pop %v732
          %v734 = vmul.f32 %v560, %v733
          %735 = vrot.lane.b32.xlu0 %v559, 120
          %v736 = vpop.permute.xlu0 %735
          %738 = vrot.lane.b32.xlu0 %v734, 120
          %v739 = vpop.permute.xlu0 %738
          %v740 = vsel %vm580, %v736, 0
          %v742 = vsel %vm580, %v739, 0
          %744 = vmatprep.subr.mxu0 0.0
          %745 = vmatpush1.xpose.msra.mxu0 0.0
          %746 = vmatprep.subr.mxu0 0.0
          %747 = vmatpush1.xpose.msra.mxu0 0.0
          %748 = vmatprep.subr.mxu0 0.0
          %749 = vmatpush1.xpose.msra.mxu0 0.0
          %750 = vmatprep.subr.mxu0 0.0
          %751 = vmatpush1.xpose.msra.mxu0 0.0
          %752 = vmatprep.subr.mxu0 0.0
          %753 = vmatpush1.xpose.msra.mxu0 0.0
          %754 = vmatprep.subr.mxu0 0.0
          %755 = vmatpush1.xpose.msra.mxu0 0.0
          %756 = vmatprep.subr.mxu0 0.0
          %757 = vmatpush1.xpose.msra.mxu0 0.0
          %758 = vmatprep.subr.mxu0 0.0
          %759 = vmatpush1.xpose.msra.mxu0 0.0
          %760 = vmatprep.subr.mxu0 0.0
          %761 = vmatpush1.xpose.msra.mxu0 0.0
          %762 = vmatprep.subr.mxu0 0.0
          %763 = vmatpush1.xpose.msra.mxu0 0.0
          %764 = vmatprep.subr.mxu0 0.0
          %765 = vmatpush1.xpose.msra.mxu0 0.0
          %766 = vmatprep.subr.mxu0 0.0
          %767 = vmatpush1.xpose.msra.mxu0 0.0
          %768 = vmatprep.subr.mxu0 0.0
          %769 = vmatpush1.xpose.msra.mxu0 0.0
          %770 = vmatprep.subr.mxu0 0.0
          %771 = vmatpush1.xpose.msra.mxu0 0.0
          %772 = vmatprep.subr.mxu0 0.0
          %773 = vmatpush1.xpose.msra.mxu0 0.0
          %774 = vmatprep.subr.mxu0 0.0
          %775 = vmatpush1.xpose.msra.mxu0 %v742
          %776 = vmatprep.subr.mxu0 0.0
          %777 = vmatpush2.xpose.msra.mxu0 0.0
          %778 = vmatprep.subr.mxu0 0.0
          %779 = vmatpush2.xpose.msra.mxu0 0.0
          %780 = vmatprep.subr.mxu0 0.0
          %781 = vmatpush2.xpose.msra.mxu0 0.0
          %782 = vmatprep.subr.mxu0 0.0
          %783 = vmatpush2.xpose.msra.mxu0 0.0
          %784 = vmatprep.subr.mxu0 0.0
          %785 = vmatpush2.xpose.msra.mxu0 0.0
          %786 = vmatprep.subr.mxu0 0.0
          %787 = vmatpush2.xpose.msra.mxu0 0.0
          %788 = vmatprep.subr.mxu0 0.0
          %789 = vmatpush2.xpose.msra.mxu0 0.0
          %790 = vmatprep.subr.mxu0 0.0
          %791 = vmatpush2.xpose.msra.mxu0 0.0
          %792 = vmatprep.subr.mxu0 0.0
          %793 = vmatpush2.xpose.msra.mxu0 0.0
          %794 = vmatprep.subr.mxu0 0.0
          %795 = vmatpush2.xpose.msra.mxu0 0.0
          %796 = vmatprep.subr.mxu0 0.0
          %797 = vmatpush2.xpose.msra.mxu0 0.0
          %798 = vmatprep.subr.mxu0 0.0
          %799 = vmatpush2.xpose.msra.mxu0 0.0
          %800 = vmatprep.subr.mxu0 0.0
          %801 = vmatpush2.xpose.msra.mxu0 0.0
          %802 = vmatprep.subr.mxu0 0.0
          %803 = vmatpush2.xpose.msra.mxu0 0.0
          %804 = vmatprep.subr.mxu0 0.0
          %805 = vmatpush2.xpose.msra.mxu0 0.0
          %806 = vmatprep.subr.mxu0 0.0
          %807 = vmatpush2.xpose.msra.mxu0 0.0
          %808 = vmatprep.mubr.f32.mxu0 0.0
          %809 = vmatmul.mubr.f32.gmra.mxu0 %v740
          %v810 = vpop.f32.mrf.mxu0
          %v811 = vadd.f32 0.0, %v810
          %v812 = vpop.f32.mrf.mxu0
          %813 = vdwg.mxu0
          %v814 = vsel %vm575, %v811, 0.0
          %816 = vrot.lane.b32.xlu0 %v561, 120
          %v817 = vpop.permute.xlu0 %816
          %v820 = vsel %vm580, %v814, 0
          %822 = vmatprep.subr.mxu0 0.0
          %823 = vmatpush1.msra.mxu0 0.0
          %824 = vmatprep.subr.mxu0 0.0
          %825 = vmatpush1.msra.mxu0 0.0
          %826 = vmatprep.subr.mxu0 0.0
          %827 = vmatpush1.msra.mxu0 0.0
          %828 = vmatprep.subr.mxu0 0.0
          %829 = vmatpush1.msra.mxu0 0.0
          %830 = vmatprep.subr.mxu0 0.0
          %831 = vmatpush1.msra.mxu0 0.0
          %832 = vmatprep.subr.mxu0 0.0
          %833 = vmatpush1.msra.mxu0 0.0
          %834 = vmatprep.subr.mxu0 0.0
          %835 = vmatpush1.msra.mxu0 0.0
          %836 = vmatprep.subr.mxu0 0.0
          %837 = vmatpush1.msra.mxu0 0.0
          %838 = vmatprep.subr.mxu0 0.0
          %839 = vmatpush1.msra.mxu0 0.0
          %840 = vmatprep.subr.mxu0 0.0
          %841 = vmatpush1.msra.mxu0 0.0
          %842 = vmatprep.subr.mxu0 0.0
          %843 = vmatpush1.msra.mxu0 0.0
          %844 = vmatprep.subr.mxu0 0.0
          %845 = vmatpush1.msra.mxu0 0.0
          %846 = vmatprep.subr.mxu0 0.0
          %847 = vmatpush1.msra.mxu0 0.0
          %848 = vmatprep.subr.mxu0 0.0
          %849 = vmatpush1.msra.mxu0 0.0
          %850 = vmatprep.subr.mxu0 0.0
          %851 = vmatpush1.msra.mxu0 0.0
          %852 = vmatprep.subr.mxu0 0.0
          %853 = vmatpush1.msra.mxu0 %v817
          %854 = vmatprep.subr.mxu0 0.0
          %855 = vmatpush2.msra.mxu0 0.0
          %856 = vmatprep.subr.mxu0 0.0
          %857 = vmatpush2.msra.mxu0 0.0
          %858 = vmatprep.subr.mxu0 0.0
          %859 = vmatpush2.msra.mxu0 0.0
          %860 = vmatprep.subr.mxu0 0.0
          %861 = vmatpush2.msra.mxu0 0.0
          %862 = vmatprep.subr.mxu0 0.0
          %863 = vmatpush2.msra.mxu0 0.0
          %864 = vmatprep.subr.mxu0 0.0
          %865 = vmatpush2.msra.mxu0 0.0
          %866 = vmatprep.subr.mxu0 0.0
          %867 = vmatpush2.msra.mxu0 0.0
          %868 = vmatprep.subr.mxu0 0.0
          %869 = vmatpush2.msra.mxu0 0.0
          %870 = vmatprep.subr.mxu0 0.0
          %871 = vmatpush2.msra.mxu0 0.0
          %872 = vmatprep.subr.mxu0 0.0
          %873 = vmatpush2.msra.mxu0 0.0
          %874 = vmatprep.subr.mxu0 0.0
          %875 = vmatpush2.msra.mxu0 0.0
          %876 = vmatprep.subr.mxu0 0.0
          %877 = vmatpush2.msra.mxu0 0.0
          %878 = vmatprep.subr.mxu0 0.0
          %879 = vmatpush2.msra.mxu0 0.0
          %880 = vmatprep.subr.mxu0 0.0
          %881 = vmatpush2.msra.mxu0 0.0
          %882 = vmatprep.subr.mxu0 0.0
          %883 = vmatpush2.msra.mxu0 0.0
          %884 = vmatprep.subr.mxu0 0.0
          %885 = vmatpush2.msra.mxu0 0.0
          %886 = vmatprep.mubr.f32.mxu0 0.0
          %887 = vmatmul.mubr.f32.gmra.mxu0 %v820
          %v888 = vpop.f32.mrf.mxu0
          %v889 = vadd.f32 0.0, %v888
          %v890 = vpop.f32.mrf.mxu0
          %891 = vdwg.mxu0
          %v892 = vmul.f32 %v568, -0.004933717
          %v893 = vmul.f32 %v892, 1.442695
          %v894 = vpow.pop %v893
          %v895 = vmul.f32 %v560, %v894
          %896 = vrot.lane.b32.xlu0 %v559, 112
          %v897 = vpop.permute.xlu0 %896
          %899 = vrot.lane.b32.xlu0 %v895, 112
          %v900 = vpop.permute.xlu0 %899
          %v901 = vsel %vm580, %v897, 0
          %v903 = vsel %vm580, %v900, 0
          %905 = vmatprep.subr.mxu0 0.0
          %906 = vmatpush1.xpose.msra.mxu0 0.0
          %907 = vmatprep.subr.mxu0 0.0
          %908 = vmatpush1.xpose.msra.mxu0 0.0
          %909 = vmatprep.subr.mxu0 0.0
          %910 = vmatpush1.xpose.msra.mxu0 0.0
          %911 = vmatprep.subr.mxu0 0.0
          %912 = vmatpush1.xpose.msra.mxu0 0.0
          %913 = vmatprep.subr.mxu0 0.0
          %914 = vmatpush1.xpose.msra.mxu0 0.0
          %915 = vmatprep.subr.mxu0 0.0
          %916 = vmatpush1.xpose.msra.mxu0 0.0
          %917 = vmatprep.subr.mxu0 0.0
          %918 = vmatpush1.xpose.msra.mxu0 0.0
          %919 = vmatprep.subr.mxu0 0.0
          %920 = vmatpush1.xpose.msra.mxu0 0.0
          %921 = vmatprep.subr.mxu0 0.0
          %922 = vmatpush1.xpose.msra.mxu0 0.0
          %923 = vmatprep.subr.mxu0 0.0
          %924 = vmatpush1.xpose.msra.mxu0 0.0
          %925 = vmatprep.subr.mxu0 0.0
          %926 = vmatpush1.xpose.msra.mxu0 0.0
          %927 = vmatprep.subr.mxu0 0.0
          %928 = vmatpush1.xpose.msra.mxu0 0.0
          %929 = vmatprep.subr.mxu0 0.0
          %930 = vmatpush1.xpose.msra.mxu0 0.0
          %931 = vmatprep.subr.mxu0 0.0
          %932 = vmatpush1.xpose.msra.mxu0 0.0
          %933 = vmatprep.subr.mxu0 0.0
          %934 = vmatpush1.xpose.msra.mxu0 0.0
          %935 = vmatprep.subr.mxu0 0.0
          %936 = vmatpush1.xpose.msra.mxu0 %v903
          %937 = vmatprep.subr.mxu0 0.0
          %938 = vmatpush2.xpose.msra.mxu0 0.0
          %939 = vmatprep.subr.mxu0 0.0
          %940 = vmatpush2.xpose.msra.mxu0 0.0
          %941 = vmatprep.subr.mxu0 0.0
          %942 = vmatpush2.xpose.msra.mxu0 0.0
          %943 = vmatprep.subr.mxu0 0.0
          %944 = vmatpush2.xpose.msra.mxu0 0.0
          %945 = vmatprep.subr.mxu0 0.0
          %946 = vmatpush2.xpose.msra.mxu0 0.0
          %947 = vmatprep.subr.mxu0 0.0
          %948 = vmatpush2.xpose.msra.mxu0 0.0
          %949 = vmatprep.subr.mxu0 0.0
          %950 = vmatpush2.xpose.msra.mxu0 0.0
          %951 = vmatprep.subr.mxu0 0.0
          %952 = vmatpush2.xpose.msra.mxu0 0.0
          %953 = vmatprep.subr.mxu0 0.0
          %954 = vmatpush2.xpose.msra.mxu0 0.0
          %955 = vmatprep.subr.mxu0 0.0
          %956 = vmatpush2.xpose.msra.mxu0 0.0
          %957 = vmatprep.subr.mxu0 0.0
          %958 = vmatpush2.xpose.msra.mxu0 0.0
          %959 = vmatprep.subr.mxu0 0.0
          %960 = vmatpush2.xpose.msra.mxu0 0.0
          %961 = vmatprep.subr.mxu0 0.0
          %962 = vmatpush2.xpose.msra.mxu0 0.0
          %963 = vmatprep.subr.mxu0 0.0
          %964 = vmatpush2.xpose.msra.mxu0 0.0
          %965 = vmatprep.subr.mxu0 0.0
          %966 = vmatpush2.xpose.msra.mxu0 0.0
          %967 = vmatprep.subr.mxu0 0.0
          %968 = vmatpush2.xpose.msra.mxu0 0.0
          %969 = vmatprep.mubr.f32.mxu0 0.0
          %970 = vmatmul.mubr.f32.gmra.mxu0 %v901
          %v971 = vpop.f32.mrf.mxu0
          %v972 = vadd.f32 0.0, %v971
          %v973 = vpop.f32.mrf.mxu0
          %974 = vdwg.mxu0
          %v975 = vsel %vm575, %v972, 0.0
          %976 = vrot.lane.b32.xlu0 %v561, 112
          %v977 = vpop.permute.xlu0 %976
          %v980 = vsel %vm580, %v975, 0
          %982 = vmatprep.subr.mxu0 0.0
          %983 = vmatpush1.msra.mxu0 0.0
          %984 = vmatprep.subr.mxu0 0.0
          %985 = vmatpush1.msra.mxu0 0.0
          %986 = vmatprep.subr.mxu0 0.0
          %987 = vmatpush1.msra.mxu0 0.0
          %988 = vmatprep.subr.mxu0 0.0
          %989 = vmatpush1.msra.mxu0 0.0
          %990 = vmatprep.subr.mxu0 0.0
          %991 = vmatpush1.msra.mxu0 0.0
          %992 = vmatprep.subr.mxu0 0.0
          %993 = vmatpush1.msra.mxu0 0.0
          %994 = vmatprep.subr.mxu0 0.0
          %995 = vmatpush1.msra.mxu0 0.0
          %996 = vmatprep.subr.mxu0 0.0
          %997 = vmatpush1.msra.mxu0 0.0
          %998 = vmatprep.subr.mxu0 0.0
          %999 = vmatpush1.msra.mxu0 0.0
          %1000 = vmatprep.subr.mxu0 0.0
          %1001 = vmatpush1.msra.mxu0 0.0
          %1002 = vmatprep.subr.mxu0 0.0
          %1003 = vmatpush1.msra.mxu0 0.0
          %1004 = vmatprep.subr.mxu0 0.0
          %1005 = vmatpush1.msra.mxu0 0.0
          %1006 = vmatprep.subr.mxu0 0.0
          %1007 = vmatpush1.msra.mxu0 0.0
          %1008 = vmatprep.subr.mxu0 0.0
          %1009 = vmatpush1.msra.mxu0 0.0
          %1010 = vmatprep.subr.mxu0 0.0
          %1011 = vmatpush1.msra.mxu0 0.0
          %1012 = vmatprep.subr.mxu0 0.0
          %1013 = vmatpush1.msra.mxu0 %v977
          %1014 = vmatprep.subr.mxu0 0.0
          %1015 = vmatpush2.msra.mxu0 0.0
          %1016 = vmatprep.subr.mxu0 0.0
          %1017 = vmatpush2.msra.mxu0 0.0
          %1018 = vmatprep.subr.mxu0 0.0
          %1019 = vmatpush2.msra.mxu0 0.0
          %1020 = vmatprep.subr.mxu0 0.0
          %1021 = vmatpush2.msra.mxu0 0.0
          %1022 = vmatprep.subr.mxu0 0.0
          %1023 = vmatpush2.msra.mxu0 0.0
          %1024 = vmatprep.subr.mxu0 0.0
          %1025 = vmatpush2.msra.mxu0 0.0
          %1026 = vmatprep.subr.mxu0 0.0
          %1027 = vmatpush2.msra.mxu0 0.0
          %1028 = vmatprep.subr.mxu0 0.0
          %1029 = vmatpush2.msra.mxu0 0.0
          %1030 = vmatprep.subr.mxu0 0.0
          %1031 = vmatpush2.msra.mxu0 0.0
          %1032 = vmatprep.subr.mxu0 0.0
          %1033 = vmatpush2.msra.mxu0 0.0
          %1034 = vmatprep.subr.mxu0 0.0
          %1035 = vmatpush2.msra.mxu0 0.0
          %1036 = vmatprep.subr.mxu0 0.0
          %1037 = vmatpush2.msra.mxu0 0.0
          %1038 = vmatprep.subr.mxu0 0.0
          %1039 = vmatpush2.msra.mxu0 0.0
          %1040 = vmatprep.subr.mxu0 0.0
          %1041 = vmatpush2.msra.mxu0 0.0
          %1042 = vmatprep.subr.mxu0 0.0
          %1043 = vmatpush2.msra.mxu0 0.0
          %1044 = vmatprep.subr.mxu0 0.0
          %1045 = vmatpush2.msra.mxu0 0.0
          %1046 = vmatprep.mubr.f32.mxu0 0.0
          %1047 = vmatmul.mubr.f32.gmra.mxu0 %v980
          %v1048 = vpop.f32.mrf.mxu0
          %v1049 = vadd.f32 0.0, %v1048
          %v1050 = vpop.f32.mrf.mxu0
          %1051 = vdwg.mxu0
          %v1052 = vmul.f32 %v568, -0.001955035
          %v1053 = vmul.f32 %v1052, 1.442695
          %v1054 = vpow.pop %v1053
          %v1055 = vmul.f32 %v560, %v1054
          %1056 = vrot.lane.b32.xlu0 %v559, 104
          %v1057 = vpop.permute.xlu0 %1056
          %1059 = vrot.lane.b32.xlu0 %v1055, 104
          %v1060 = vpop.permute.xlu0 %1059
          %v1061 = vsel %vm580, %v1057, 0
          %v1063 = vsel %vm580, %v1060, 0
          %1065 = vmatprep.subr.mxu0 0.0
          %1066 = vmatpush1.xpose.msra.mxu0 0.0
          %1067 = vmatprep.subr.mxu0 0.0
          %1068 = vmatpush1.xpose.msra.mxu0 0.0
          %1069 = vmatprep.subr.mxu0 0.0
          %1070 = vmatpush1.xpose.msra.mxu0 0.0
          %1071 = vmatprep.subr.mxu0 0.0
          %1072 = vmatpush1.xpose.msra.mxu0 0.0
          %1073 = vmatprep.subr.mxu0 0.0
          %1074 = vmatpush1.xpose.msra.mxu0 0.0
          %1075 = vmatprep.subr.mxu0 0.0
          %1076 = vmatpush1.xpose.msra.mxu0 0.0
          %1077 = vmatprep.subr.mxu0 0.0
          %1078 = vmatpush1.xpose.msra.mxu0 0.0
          %1079 = vmatprep.subr.mxu0 0.0
          %1080 = vmatpush1.xpose.msra.mxu0 0.0
          %1081 = vmatprep.subr.mxu0 0.0
          %1082 = vmatpush1.xpose.msra.mxu0 0.0
          %1083 = vmatprep.subr.mxu0 0.0
          %1084 = vmatpush1.xpose.msra.mxu0 0.0
          %1085 = vmatprep.subr.mxu0 0.0
          %1086 = vmatpush1.xpose.msra.mxu0 0.0
          %1087 = vmatprep.subr.mxu0 0.0
          %1088 = vmatpush1.xpose.msra.mxu0 0.0
          %1089 = vmatprep.subr.mxu0 0.0
          %1090 = vmatpush1.xpose.msra.mxu0 0.0
          %1091 = vmatprep.subr.mxu0 0.0
          %1092 = vmatpush1.xpose.msra.mxu0 0.0
          %1093 = vmatprep.subr.mxu0 0.0
          %1094 = vmatpush1.xpose.msra.mxu0 0.0
          %1095 = vmatprep.subr.mxu0 0.0
          %1096 = vmatpush1.xpose.msra.mxu0 %v1063
          %1097 = vmatprep.subr.mxu0 0.0
          %1098 = vmatpush2.xpose.msra.mxu0 0.0
          %1099 = vmatprep.subr.mxu0 0.0
          %1100 = vmatpush2.xpose.msra.mxu0 0.0
          %1101 = vmatprep.subr.mxu0 0.0
          %1102 = vmatpush2.xpose.msra.mxu0 0.0
          %1103 = vmatprep.subr.mxu0 0.0
          %1104 = vmatpush2.xpose.msra.mxu0 0.0
          %1105 = vmatprep.subr.mxu0 0.0
          %1106 = vmatpush2.xpose.msra.mxu0 0.0
          %1107 = vmatprep.subr.mxu0 0.0
          %1108 = vmatpush2.xpose.msra.mxu0 0.0
          %1109 = vmatprep.subr.mxu0 0.0
          %1110 = vmatpush2.xpose.msra.mxu0 0.0
          %1111 = vmatprep.subr.mxu0 0.0
          %1112 = vmatpush2.xpose.msra.mxu0 0.0
          %1113 = vmatprep.subr.mxu0 0.0
          %1114 = vmatpush2.xpose.msra.mxu0 0.0
          %1115 = vmatprep.subr.mxu0 0.0
          %1116 = vmatpush2.xpose.msra.mxu0 0.0
          %1117 = vmatprep.subr.mxu0 0.0
          %1118 = vmatpush2.xpose.msra.mxu0 0.0
          %1119 = vmatprep.subr.mxu0 0.0
          %1120 = vmatpush2.xpose.msra.mxu0 0.0
          %1121 = vmatprep.subr.mxu0 0.0
          %1122 = vmatpush2.xpose.msra.mxu0 0.0
          %1123 = vmatprep.subr.mxu0 0.0
          %1124 = vmatpush2.xpose.msra.mxu0 0.0
          %1125 = vmatprep.subr.mxu0 0.0
          %1126 = vmatpush2.xpose.msra.mxu0 0.0
          %1127 = vmatprep.subr.mxu0 0.0
          %1128 = vmatpush2.xpose.msra.mxu0 0.0
          %1129 = vmatprep.mubr.f32.mxu0 0.0
          %1130 = vmatmul.mubr.f32.gmra.mxu0 %v1061
          %v1131 = vpop.f32.mrf.mxu0
          %v1132 = vadd.f32 0.0, %v1131
          %v1133 = vpop.f32.mrf.mxu0
          %1134 = vdwg.mxu0
          %v1135 = vsel %vm575, %v1132, 0.0
          %1136 = vrot.lane.b32.xlu0 %v561, 104
          %v1137 = vpop.permute.xlu0 %1136
          %v1140 = vsel %vm580, %v1135, 0
          %1142 = vmatprep.subr.mxu0 0.0
          %1143 = vmatpush1.msra.mxu0 0.0
          %1144 = vmatprep.subr.mxu0 0.0
          %1145 = vmatpush1.msra.mxu0 0.0
          %1146 = vmatprep.subr.mxu0 0.0
          %1147 = vmatpush1.msra.mxu0 0.0
          %1148 = vmatprep.subr.mxu0 0.0
          %1149 = vmatpush1.msra.mxu0 0.0
          %1150 = vmatprep.subr.mxu0 0.0
          %1151 = vmatpush1.msra.mxu0 0.0
          %1152 = vmatprep.subr.mxu0 0.0
          %1153 = vmatpush1.msra.mxu0 0.0
          %1154 = vmatprep.subr.mxu0 0.0
          %1155 = vmatpush1.msra.mxu0 0.0
          %1156 = vmatprep.subr.mxu0 0.0
          %1157 = vmatpush1.msra.mxu0 0.0
          %1158 = vmatprep.subr.mxu0 0.0
          %1159 = vmatpush1.msra.mxu0 0.0
          %1160 = vmatprep.subr.mxu0 0.0
          %1161 = vmatpush1.msra.mxu0 0.0
          %1162 = vmatprep.subr.mxu0 0.0
          %1163 = vmatpush1.msra.mxu0 0.0
          %1164 = vmatprep.subr.mxu0 0.0
          %1165 = vmatpush1.msra.mxu0 0.0
          %1166 = vmatprep.subr.mxu0 0.0
          %1167 = vmatpush1.msra.mxu0 0.0
          %1168 = vmatprep.subr.mxu0 0.0
          %1169 = vmatpush1.msra.mxu0 0.0
          %1170 = vmatprep.subr.mxu0 0.0
          %1171 = vmatpush1.msra.mxu0 0.0
          %1172 = vmatprep.subr.mxu0 0.0
          %1173 = vmatpush1.msra.mxu0 %v1137
          %1174 = vmatprep.subr.mxu0 0.0
          %1175 = vmatpush2.msra.mxu0 0.0
          %1176 = vmatprep.subr.mxu0 0.0
          %1177 = vmatpush2.msra.mxu0 0.0
          %1178 = vmatprep.subr.mxu0 0.0
          %1179 = vmatpush2.msra.mxu0 0.0
          %1180 = vmatprep.subr.mxu0 0.0
          %1181 = vmatpush2.msra.mxu0 0.0
          %1182 = vmatprep.subr.mxu0 0.0
          %1183 = vmatpush2.msra.mxu0 0.0
          %1184 = vmatprep.subr.mxu0 0.0
          %1185 = vmatpush2.msra.mxu0 0.0
          %1186 = vmatprep.subr.mxu0 0.0
          %1187 = vmatpush2.msra.mxu0 0.0
          %1188 = vmatprep.subr.mxu0 0.0
          %1189 = vmatpush2.msra.mxu0 0.0
          %1190 = vmatprep.subr.mxu0 0.0
          %1191 = vmatpush2.msra.mxu0 0.0
          %1192 = vmatprep.subr.mxu0 0.0
          %1193 = vmatpush2.msra.mxu0 0.0
          %1194 = vmatprep.subr.mxu0 0.0
          %1195 = vmatpush2.msra.mxu0 0.0
          %1196 = vmatprep.subr.mxu0 0.0
          %1197 = vmatpush2.msra.mxu0 0.0
          %1198 = vmatprep.subr.mxu0 0.0
          %1199 = vmatpush2.msra.mxu0 0.0
          %1200 = vmatprep.subr.mxu0 0.0
          %1201 = vmatpush2.msra.mxu0 0.0
          %1202 = vmatprep.subr.mxu0 0.0
          %1203 = vmatpush2.msra.mxu0 0.0
          %1204 = vmatprep.subr.mxu0 0.0
          %1205 = vmatpush2.msra.mxu0 0.0
          %1206 = vmatprep.mubr.f32.mxu0 0.0
          %1207 = vmatmul.mubr.f32.gmra.mxu0 %v1140
          %v1208 = vpop.f32.mrf.mxu0
          %v1209 = vadd.f32 0.0, %v1208
          %v1210 = vpop.f32.mrf.mxu0
          %1211 = vdwg.mxu0
          %v1212 = vld [vmem:[#allocation2] sm:$0xff]
          %1214 = vrot.lane.b32.xlu0 %v889, 8
          %v1215 = vpop.permute.xlu0 %1214
          %1218 = vrot.lane.b32.xlu0 %v1049, 16
          %v1219 = vpop.permute.xlu0 %1218
          %1222 = vrot.lane.b32.xlu0 %v1209, 24
          %v1223 = vpop.permute.xlu0 %1222
          %v1225 = vsel %vm580, %v728, %v1215
          %vm1226 = vcmask 130048
          %v1227 = vsel %vm1226, %v1225, %v1219
          %vm1228 = vcmask 195584
          %v1229 = vsel %vm1228, %v1227, %v1223
          %v1230 = vadd.f32 %v1212, %v1229
          %vm1231 = vcmask 261120
          %1232 = vst.msk [vmem:[#allocation2] sm:$0xff] %vm1231, %v1230
        $region84: #{tpu_custom_call.1} parent=51 // pred_fallthru
          _
        %p1233 = scmp.le.s32.totalorder %s554, %s519
        // Predicated region
        $region85: #{tpu_custom_call.1} parent=51 // pred_check
          %p1234 = pneg %p1233
        $region86: #{tpu_custom_call.1} parent=51 // pred_check_branch
          %1236 = sbr.rel (%p1234) target = $region88
        $region87: #{tpu_custom_call.1} parent=51 // pred_region
          %v1237 = vld [vmem:[#allocation3] sm:$0xff]
          %v1238 = vld [vmem:[%s447] sm:$0xff]
          %v1239 = vld [vmem:[%s456] sm:$0xff]
          %v1240 = vlaneseq
          %v1241 = vshrl.u32 %v1240, 7
          %s1242 = ssub.s32 %s519, %s520
          %s1243 = scvt.s32.f32 %s1242
          %v1244 = vcvt.s32.f32 %v1241
          %v1245 = vstv %s1243
          %v1246 = vsub.f32 %v1245, %v1244
          %v1247 = vmul.f32 %v1246, -0.031748697
          %v1248 = vmul.f32 %v1247, 1.442695
          %v1249 = vpow.pop %v1248
          %v1250 = vmul.f32 %v1238, %v1249
          %vm1251 = vcmask 64512
          %v1253 = vsel %vm1251, %v1237, 0
          %v1256 = vsel %vm1251, %v1250, 0
          %1258 = vmatprep.subr.mxu0 0.0
          %1259 = vmatpush1.xpose.msra.mxu0 0.0
          %1260 = vmatprep.subr.mxu0 0.0
          %1261 = vmatpush1.xpose.msra.mxu0 0.0
          %1262 = vmatprep.subr.mxu0 0.0
          %1263 = vmatpush1.xpose.msra.mxu0 0.0
          %1264 = vmatprep.subr.mxu0 0.0
          %1265 = vmatpush1.xpose.msra.mxu0 0.0
          %1266 = vmatprep.subr.mxu0 0.0
          %1267 = vmatpush1.xpose.msra.mxu0 0.0
          %1268 = vmatprep.subr.mxu0 0.0
          %1269 = vmatpush1.xpose.msra.mxu0 0.0
          %1270 = vmatprep.subr.mxu0 0.0
          %1271 = vmatpush1.xpose.msra.mxu0 0.0
          %1272 = vmatprep.subr.mxu0 0.0
          %1273 = vmatpush1.xpose.msra.mxu0 0.0
          %1274 = vmatprep.subr.mxu0 0.0
          %1275 = vmatpush1.xpose.msra.mxu0 0.0
          %1276 = vmatprep.subr.mxu0 0.0
          %1277 = vmatpush1.xpose.msra.mxu0 0.0
          %1278 = vmatprep.subr.mxu0 0.0
          %1279 = vmatpush1.xpose.msra.mxu0 0.0
          %1280 = vmatprep.subr.mxu0 0.0
          %1281 = vmatpush1.xpose.msra.mxu0 0.0
          %1282 = vmatprep.subr.mxu0 0.0
          %1283 = vmatpush1.xpose.msra.mxu0 0.0
          %1284 = vmatprep.subr.mxu0 0.0
          %1285 = vmatpush1.xpose.msra.mxu0 0.0
          %1286 = vmatprep.subr.mxu0 0.0
          %1287 = vmatpush1.xpose.msra.mxu0 0.0
          %1288 = vmatprep.subr.mxu0 0.0
          %1289 = vmatpush1.xpose.msra.mxu0 %v1256
          %1290 = vmatprep.subr.mxu0 0.0
          %1291 = vmatpush2.xpose.msra.mxu0 0.0
          %1292 = vmatprep.subr.mxu0 0.0
          %1293 = vmatpush2.xpose.msra.mxu0 0.0
          %1294 = vmatprep.subr.mxu0 0.0
          %1295 = vmatpush2.xpose.msra.mxu0 0.0
          %1296 = vmatprep.subr.mxu0 0.0
          %1297 = vmatpush2.xpose.msra.mxu0 0.0
          %1298 = vmatprep.subr.mxu0 0.0
          %1299 = vmatpush2.xpose.msra.mxu0 0.0
          %1300 = vmatprep.subr.mxu0 0.0
          %1301 = vmatpush2.xpose.msra.mxu0 0.0
          %1302 = vmatprep.subr.mxu0 0.0
          %1303 = vmatpush2.xpose.msra.mxu0 0.0
          %1304 = vmatprep.subr.mxu0 0.0
          %1305 = vmatpush2.xpose.msra.mxu0 0.0
          %1306 = vmatprep.subr.mxu0 0.0
          %1307 = vmatpush2.xpose.msra.mxu0 0.0
          %1308 = vmatprep.subr.mxu0 0.0
          %1309 = vmatpush2.xpose.msra.mxu0 0.0
          %1310 = vmatprep.subr.mxu0 0.0
          %1311 = vmatpush2.xpose.msra.mxu0 0.0
          %1312 = vmatprep.subr.mxu0 0.0
          %1313 = vmatpush2.xpose.msra.mxu0 0.0
          %1314 = vmatprep.subr.mxu0 0.0
          %1315 = vmatpush2.xpose.msra.mxu0 0.0
          %1316 = vmatprep.subr.mxu0 0.0
          %1317 = vmatpush2.xpose.msra.mxu0 0.0
          %1318 = vmatprep.subr.mxu0 0.0
          %1319 = vmatpush2.xpose.msra.mxu0 0.0
          %1320 = vmatprep.subr.mxu0 0.0
          %1321 = vmatpush2.xpose.msra.mxu0 0.0
          %1322 = vmatprep.mubr.f32.mxu0 0.0
          %1323 = vmatmul.mubr.f32.gmra.mxu0 %v1253
          %v1324 = vpop.f32.mrf.mxu0
          %v1325 = vadd.f32 0.0, %v1324
          %v1326 = vpop.f32.mrf.mxu0
          %1327 = vdwg.mxu0
          %v1329 = vsel %vm1251, %v1325, 0
          %1331 = vmatprep.subr.mxu0 0.0
          %1332 = vmatpush1.msra.mxu0 0.0
          %1333 = vmatprep.subr.mxu0 0.0
          %1334 = vmatpush1.msra.mxu0 0.0
          %1335 = vmatprep.subr.mxu0 0.0
          %1336 = vmatpush1.msra.mxu0 0.0
          %1337 = vmatprep.subr.mxu0 0.0
          %1338 = vmatpush1.msra.mxu0 0.0
          %1339 = vmatprep.subr.mxu0 0.0
          %1340 = vmatpush1.msra.mxu0 0.0
          %1341 = vmatprep.subr.mxu0 0.0
          %1342 = vmatpush1.msra.mxu0 0.0
          %1343 = vmatprep.subr.mxu0 0.0
          %1344 = vmatpush1.msra.mxu0 0.0
          %1345 = vmatprep.subr.mxu0 0.0
          %1346 = vmatpush1.msra.mxu0 0.0
          %1347 = vmatprep.subr.mxu0 0.0
          %1348 = vmatpush1.msra.mxu0 0.0
          %1349 = vmatprep.subr.mxu0 0.0
          %1350 = vmatpush1.msra.mxu0 0.0
          %1351 = vmatprep.subr.mxu0 0.0
          %1352 = vmatpush1.msra.mxu0 0.0
          %1353 = vmatprep.subr.mxu0 0.0
          %1354 = vmatpush1.msra.mxu0 0.0
          %1355 = vmatprep.subr.mxu0 0.0
          %1356 = vmatpush1.msra.mxu0 0.0
          %1357 = vmatprep.subr.mxu0 0.0
          %1358 = vmatpush1.msra.mxu0 0.0
          %1359 = vmatprep.subr.mxu0 0.0
          %1360 = vmatpush1.msra.mxu0 0.0
          %1361 = vmatprep.subr.mxu0 0.0
          %1362 = vmatpush1.msra.mxu0 %v1239
          %1363 = vmatprep.subr.mxu0 0.0
          %1364 = vmatpush2.msra.mxu0 0.0
          %1365 = vmatprep.subr.mxu0 0.0
          %1366 = vmatpush2.msra.mxu0 0.0
          %1367 = vmatprep.subr.mxu0 0.0
          %1368 = vmatpush2.msra.mxu0 0.0
          %1369 = vmatprep.subr.mxu0 0.0
          %1370 = vmatpush2.msra.mxu0 0.0
          %1371 = vmatprep.subr.mxu0 0.0
          %1372 = vmatpush2.msra.mxu0 0.0
          %1373 = vmatprep.subr.mxu0 0.0
          %1374 = vmatpush2.msra.mxu0 0.0
          %1375 = vmatprep.subr.mxu0 0.0
          %1376 = vmatpush2.msra.mxu0 0.0
          %1377 = vmatprep.subr.mxu0 0.0
          %1378 = vmatpush2.msra.mxu0 0.0
          %1379 = vmatprep.subr.mxu0 0.0
          %1380 = vmatpush2.msra.mxu0 0.0
          %1381 = vmatprep.subr.mxu0 0.0
          %1382 = vmatpush2.msra.mxu0 0.0
          %1383 = vmatprep.subr.mxu0 0.0
          %1384 = vmatpush2.msra.mxu0 0.0
          %1385 = vmatprep.subr.mxu0 0.0
          %1386 = vmatpush2.msra.mxu0 0.0
          %1387 = vmatprep.subr.mxu0 0.0
          %1388 = vmatpush2.msra.mxu0 0.0
          %1389 = vmatprep.subr.mxu0 0.0
          %1390 = vmatpush2.msra.mxu0 0.0
          %1391 = vmatprep.subr.mxu0 0.0
          %1392 = vmatpush2.msra.mxu0 0.0
          %1393 = vmatprep.subr.mxu0 0.0
          %1394 = vmatpush2.msra.mxu0 0.0
          %1395 = vmatprep.mubr.f32.mxu0 0.0
          %1396 = vmatmul.mubr.f32.gmra.mxu0 %v1329
          %v1397 = vpop.f32.mrf.mxu0
          %v1398 = vadd.f32 0.0, %v1397
          %v1399 = vpop.f32.mrf.mxu0
          %1400 = vdwg.mxu0
          %v1401 = vmul.f32 %v1246, -0.012479112
          %v1402 = vmul.f32 %v1401, 1.442695
          %v1403 = vpow.pop %v1402
          %v1404 = vmul.f32 %v1238, %v1403
          %1405 = vrot.lane.b32.xlu0 %v1237, 120
          %v1406 = vpop.permute.xlu0 %1405
          %1408 = vrot.lane.b32.xlu0 %v1404, 120
          %v1409 = vpop.permute.xlu0 %1408
          %v1410 = vsel %vm1251, %v1406, 0
          %v1412 = vsel %vm1251, %v1409, 0
          %1414 = vmatprep.subr.mxu0 0.0
          %1415 = vmatpush1.xpose.msra.mxu0 0.0
          %1416 = vmatprep.subr.mxu0 0.0
          %1417 = vmatpush1.xpose.msra.mxu0 0.0
          %1418 = vmatprep.subr.mxu0 0.0
          %1419 = vmatpush1.xpose.msra.mxu0 0.0
          %1420 = vmatprep.subr.mxu0 0.0
          %1421 = vmatpush1.xpose.msra.mxu0 0.0
          %1422 = vmatprep.subr.mxu0 0.0
          %1423 = vmatpush1.xpose.msra.mxu0 0.0
          %1424 = vmatprep.subr.mxu0 0.0
          %1425 = vmatpush1.xpose.msra.mxu0 0.0
          %1426 = vmatprep.subr.mxu0 0.0
          %1427 = vmatpush1.xpose.msra.mxu0 0.0
          %1428 = vmatprep.subr.mxu0 0.0
          %1429 = vmatpush1.xpose.msra.mxu0 0.0
          %1430 = vmatprep.subr.mxu0 0.0
          %1431 = vmatpush1.xpose.msra.mxu0 0.0
          %1432 = vmatprep.subr.mxu0 0.0
          %1433 = vmatpush1.xpose.msra.mxu0 0.0
          %1434 = vmatprep.subr.mxu0 0.0
          %1435 = vmatpush1.xpose.msra.mxu0 0.0
          %1436 = vmatprep.subr.mxu0 0.0
          %1437 = vmatpush1.xpose.msra.mxu0 0.0
          %1438 = vmatprep.subr.mxu0 0.0
          %1439 = vmatpush1.xpose.msra.mxu0 0.0
          %1440 = vmatprep.subr.mxu0 0.0
          %1441 = vmatpush1.xpose.msra.mxu0 0.0
          %1442 = vmatprep.subr.mxu0 0.0
          %1443 = vmatpush1.xpose.msra.mxu0 0.0
          %1444 = vmatprep.subr.mxu0 0.0
          %1445 = vmatpush1.xpose.msra.mxu0 %v1412
          %1446 = vmatprep.subr.mxu0 0.0
          %1447 = vmatpush2.xpose.msra.mxu0 0.0
          %1448 = vmatprep.subr.mxu0 0.0
          %1449 = vmatpush2.xpose.msra.mxu0 0.0
          %1450 = vmatprep.subr.mxu0 0.0
          %1451 = vmatpush2.xpose.msra.mxu0 0.0
          %1452 = vmatprep.subr.mxu0 0.0
          %1453 = vmatpush2.xpose.msra.mxu0 0.0
          %1454 = vmatprep.subr.mxu0 0.0
          %1455 = vmatpush2.xpose.msra.mxu0 0.0
          %1456 = vmatprep.subr.mxu0 0.0
          %1457 = vmatpush2.xpose.msra.mxu0 0.0
          %1458 = vmatprep.subr.mxu0 0.0
          %1459 = vmatpush2.xpose.msra.mxu0 0.0
          %1460 = vmatprep.subr.mxu0 0.0
          %1461 = vmatpush2.xpose.msra.mxu0 0.0
          %1462 = vmatprep.subr.mxu0 0.0
          %1463 = vmatpush2.xpose.msra.mxu0 0.0
          %1464 = vmatprep.subr.mxu0 0.0
          %1465 = vmatpush2.xpose.msra.mxu0 0.0
          %1466 = vmatprep.subr.mxu0 0.0
          %1467 = vmatpush2.xpose.msra.mxu0 0.0
          %1468 = vmatprep.subr.mxu0 0.0
          %1469 = vmatpush2.xpose.msra.mxu0 0.0
          %1470 = vmatprep.subr.mxu0 0.0
          %1471 = vmatpush2.xpose.msra.mxu0 0.0
          %1472 = vmatprep.subr.mxu0 0.0
          %1473 = vmatpush2.xpose.msra.mxu0 0.0
          %1474 = vmatprep.subr.mxu0 0.0
          %1475 = vmatpush2.xpose.msra.mxu0 0.0
          %1476 = vmatprep.subr.mxu0 0.0
          %1477 = vmatpush2.xpose.msra.mxu0 0.0
          %1478 = vmatprep.mubr.f32.mxu0 0.0
          %1479 = vmatmul.mubr.f32.gmra.mxu0 %v1410
          %v1480 = vpop.f32.mrf.mxu0
          %v1481 = vadd.f32 0.0, %v1480
          %v1482 = vpop.f32.mrf.mxu0
          %1483 = vdwg.mxu0
          %1485 = vrot.lane.b32.xlu0 %v1239, 120
          %v1486 = vpop.permute.xlu0 %1485
          %v1489 = vsel %vm1251, %v1481, 0
          %1491 = vmatprep.subr.mxu0 0.0
          %1492 = vmatpush1.msra.mxu0 0.0
          %1493 = vmatprep.subr.mxu0 0.0
          %1494 = vmatpush1.msra.mxu0 0.0
          %1495 = vmatprep.subr.mxu0 0.0
          %1496 = vmatpush1.msra.mxu0 0.0
          %1497 = vmatprep.subr.mxu0 0.0
          %1498 = vmatpush1.msra.mxu0 0.0
          %1499 = vmatprep.subr.mxu0 0.0
          %1500 = vmatpush1.msra.mxu0 0.0
          %1501 = vmatprep.subr.mxu0 0.0
          %1502 = vmatpush1.msra.mxu0 0.0
          %1503 = vmatprep.subr.mxu0 0.0
          %1504 = vmatpush1.msra.mxu0 0.0
          %1505 = vmatprep.subr.mxu0 0.0
          %1506 = vmatpush1.msra.mxu0 0.0
          %1507 = vmatprep.subr.mxu0 0.0
          %1508 = vmatpush1.msra.mxu0 0.0
          %1509 = vmatprep.subr.mxu0 0.0
          %1510 = vmatpush1.msra.mxu0 0.0
          %1511 = vmatprep.subr.mxu0 0.0
          %1512 = vmatpush1.msra.mxu0 0.0
          %1513 = vmatprep.subr.mxu0 0.0
          %1514 = vmatpush1.msra.mxu0 0.0
          %1515 = vmatprep.subr.mxu0 0.0
          %1516 = vmatpush1.msra.mxu0 0.0
          %1517 = vmatprep.subr.mxu0 0.0
          %1518 = vmatpush1.msra.mxu0 0.0
          %1519 = vmatprep.subr.mxu0 0.0
          %1520 = vmatpush1.msra.mxu0 0.0
          %1521 = vmatprep.subr.mxu0 0.0
          %1522 = vmatpush1.msra.mxu0 %v1486
          %1523 = vmatprep.subr.mxu0 0.0
          %1524 = vmatpush2.msra.mxu0 0.0
          %1525 = vmatprep.subr.mxu0 0.0
          %1526 = vmatpush2.msra.mxu0 0.0
          %1527 = vmatprep.subr.mxu0 0.0
          %1528 = vmatpush2.msra.mxu0 0.0
          %1529 = vmatprep.subr.mxu0 0.0
          %1530 = vmatpush2.msra.mxu0 0.0
          %1531 = vmatprep.subr.mxu0 0.0
          %1532 = vmatpush2.msra.mxu0 0.0
          %1533 = vmatprep.subr.mxu0 0.0
          %1534 = vmatpush2.msra.mxu0 0.0
          %1535 = vmatprep.subr.mxu0 0.0
          %1536 = vmatpush2.msra.mxu0 0.0
          %1537 = vmatprep.subr.mxu0 0.0
          %1538 = vmatpush2.msra.mxu0 0.0
          %1539 = vmatprep.subr.mxu0 0.0
          %1540 = vmatpush2.msra.mxu0 0.0
          %1541 = vmatprep.subr.mxu0 0.0
          %1542 = vmatpush2.msra.mxu0 0.0
          %1543 = vmatprep.subr.mxu0 0.0
          %1544 = vmatpush2.msra.mxu0 0.0
          %1545 = vmatprep.subr.mxu0 0.0
          %1546 = vmatpush2.msra.mxu0 0.0
          %1547 = vmatprep.subr.mxu0 0.0
          %1548 = vmatpush2.msra.mxu0 0.0
          %1549 = vmatprep.subr.mxu0 0.0
          %1550 = vmatpush2.msra.mxu0 0.0
          %1551 = vmatprep.subr.mxu0 0.0
          %1552 = vmatpush2.msra.mxu0 0.0
          %1553 = vmatprep.subr.mxu0 0.0
          %1554 = vmatpush2.msra.mxu0 0.0
          %1555 = vmatprep.mubr.f32.mxu0 0.0
          %1556 = vmatmul.mubr.f32.gmra.mxu0 %v1489
          %v1557 = vpop.f32.mrf.mxu0
          %v1558 = vadd.f32 0.0, %v1557
          %v1559 = vpop.f32.mrf.mxu0
          %1560 = vdwg.mxu0
          %v1561 = vmul.f32 %v1246, -0.004933717
          %v1562 = vmul.f32 %v1561, 1.442695
          %v1563 = vpow.pop %v1562
          %v1564 = vmul.f32 %v1238, %v1563
          %1565 = vrot.lane.b32.xlu0 %v1237, 112
          %v1566 = vpop.permute.xlu0 %1565
          %1568 = vrot.lane.b32.xlu0 %v1564, 112
          %v1569 = vpop.permute.xlu0 %1568
          %v1570 = vsel %vm1251, %v1566, 0
          %v1572 = vsel %vm1251, %v1569, 0
          %1574 = vmatprep.subr.mxu0 0.0
          %1575 = vmatpush1.xpose.msra.mxu0 0.0
          %1576 = vmatprep.subr.mxu0 0.0
          %1577 = vmatpush1.xpose.msra.mxu0 0.0
          %1578 = vmatprep.subr.mxu0 0.0
          %1579 = vmatpush1.xpose.msra.mxu0 0.0
          %1580 = vmatprep.subr.mxu0 0.0
          %1581 = vmatpush1.xpose.msra.mxu0 0.0
          %1582 = vmatprep.subr.mxu0 0.0
          %1583 = vmatpush1.xpose.msra.mxu0 0.0
          %1584 = vmatprep.subr.mxu0 0.0
          %1585 = vmatpush1.xpose.msra.mxu0 0.0
          %1586 = vmatprep.subr.mxu0 0.0
          %1587 = vmatpush1.xpose.msra.mxu0 0.0
          %1588 = vmatprep.subr.mxu0 0.0
          %1589 = vmatpush1.xpose.msra.mxu0 0.0
          %1590 = vmatprep.subr.mxu0 0.0
          %1591 = vmatpush1.xpose.msra.mxu0 0.0
          %1592 = vmatprep.subr.mxu0 0.0
          %1593 = vmatpush1.xpose.msra.mxu0 0.0
          %1594 = vmatprep.subr.mxu0 0.0
          %1595 = vmatpush1.xpose.msra.mxu0 0.0
          %1596 = vmatprep.subr.mxu0 0.0
          %1597 = vmatpush1.xpose.msra.mxu0 0.0
          %1598 = vmatprep.subr.mxu0 0.0
          %1599 = vmatpush1.xpose.msra.mxu0 0.0
          %1600 = vmatprep.subr.mxu0 0.0
          %1601 = vmatpush1.xpose.msra.mxu0 0.0
          %1602 = vmatprep.subr.mxu0 0.0
          %1603 = vmatpush1.xpose.msra.mxu0 0.0
          %1604 = vmatprep.subr.mxu0 0.0
          %1605 = vmatpush1.xpose.msra.mxu0 %v1572
          %1606 = vmatprep.subr.mxu0 0.0
          %1607 = vmatpush2.xpose.msra.mxu0 0.0
          %1608 = vmatprep.subr.mxu0 0.0
          %1609 = vmatpush2.xpose.msra.mxu0 0.0
          %1610 = vmatprep.subr.mxu0 0.0
          %1611 = vmatpush2.xpose.msra.mxu0 0.0
          %1612 = vmatprep.subr.mxu0 0.0
          %1613 = vmatpush2.xpose.msra.mxu0 0.0
          %1614 = vmatprep.subr.mxu0 0.0
          %1615 = vmatpush2.xpose.msra.mxu0 0.0
          %1616 = vmatprep.subr.mxu0 0.0
          %1617 = vmatpush2.xpose.msra.mxu0 0.0
          %1618 = vmatprep.subr.mxu0 0.0
          %1619 = vmatpush2.xpose.msra.mxu0 0.0
          %1620 = vmatprep.subr.mxu0 0.0
          %1621 = vmatpush2.xpose.msra.mxu0 0.0
          %1622 = vmatprep.subr.mxu0 0.0
          %1623 = vmatpush2.xpose.msra.mxu0 0.0
          %1624 = vmatprep.subr.mxu0 0.0
          %1625 = vmatpush2.xpose.msra.mxu0 0.0
          %1626 = vmatprep.subr.mxu0 0.0
          %1627 = vmatpush2.xpose.msra.mxu0 0.0
          %1628 = vmatprep.subr.mxu0 0.0
          %1629 = vmatpush2.xpose.msra.mxu0 0.0
          %1630 = vmatprep.subr.mxu0 0.0
          %1631 = vmatpush2.xpose.msra.mxu0 0.0
          %1632 = vmatprep.subr.mxu0 0.0
          %1633 = vmatpush2.xpose.msra.mxu0 0.0
          %1634 = vmatprep.subr.mxu0 0.0
          %1635 = vmatpush2.xpose.msra.mxu0 0.0
          %1636 = vmatprep.subr.mxu0 0.0
          %1637 = vmatpush2.xpose.msra.mxu0 0.0
          %1638 = vmatprep.mubr.f32.mxu0 0.0
          %1639 = vmatmul.mubr.f32.gmra.mxu0 %v1570
          %v1640 = vpop.f32.mrf.mxu0
          %v1641 = vadd.f32 0.0, %v1640
          %v1642 = vpop.f32.mrf.mxu0
          %1643 = vdwg.mxu0
          %1644 = vrot.lane.b32.xlu0 %v1239, 112
          %v1645 = vpop.permute.xlu0 %1644
          %v1648 = vsel %vm1251, %v1641, 0
          %1650 = vmatprep.subr.mxu0 0.0
          %1651 = vmatpush1.msra.mxu0 0.0
          %1652 = vmatprep.subr.mxu0 0.0
          %1653 = vmatpush1.msra.mxu0 0.0
          %1654 = vmatprep.subr.mxu0 0.0
          %1655 = vmatpush1.msra.mxu0 0.0
          %1656 = vmatprep.subr.mxu0 0.0
          %1657 = vmatpush1.msra.mxu0 0.0
          %1658 = vmatprep.subr.mxu0 0.0
          %1659 = vmatpush1.msra.mxu0 0.0
          %1660 = vmatprep.subr.mxu0 0.0
          %1661 = vmatpush1.msra.mxu0 0.0
          %1662 = vmatprep.subr.mxu0 0.0
          %1663 = vmatpush1.msra.mxu0 0.0
          %1664 = vmatprep.subr.mxu0 0.0
          %1665 = vmatpush1.msra.mxu0 0.0
          %1666 = vmatprep.subr.mxu0 0.0
          %1667 = vmatpush1.msra.mxu0 0.0
          %1668 = vmatprep.subr.mxu0 0.0
          %1669 = vmatpush1.msra.mxu0 0.0
          %1670 = vmatprep.subr.mxu0 0.0
          %1671 = vmatpush1.msra.mxu0 0.0
          %1672 = vmatprep.subr.mxu0 0.0
          %1673 = vmatpush1.msra.mxu0 0.0
          %1674 = vmatprep.subr.mxu0 0.0
          %1675 = vmatpush1.msra.mxu0 0.0
          %1676 = vmatprep.subr.mxu0 0.0
          %1677 = vmatpush1.msra.mxu0 0.0
          %1678 = vmatprep.subr.mxu0 0.0
          %1679 = vmatpush1.msra.mxu0 0.0
          %1680 = vmatprep.subr.mxu0 0.0
          %1681 = vmatpush1.msra.mxu0 %v1645
          %1682 = vmatprep.subr.mxu0 0.0
          %1683 = vmatpush2.msra.mxu0 0.0
          %1684 = vmatprep.subr.mxu0 0.0
          %1685 = vmatpush2.msra.mxu0 0.0
          %1686 = vmatprep.subr.mxu0 0.0
          %1687 = vmatpush2.msra.mxu0 0.0
          %1688 = vmatprep.subr.mxu0 0.0
          %1689 = vmatpush2.msra.mxu0 0.0
          %1690 = vmatprep.subr.mxu0 0.0
          %1691 = vmatpush2.msra.mxu0 0.0
          %1692 = vmatprep.subr.mxu0 0.0
          %1693 = vmatpush2.msra.mxu0 0.0
          %1694 = vmatprep.subr.mxu0 0.0
          %1695 = vmatpush2.msra.mxu0 0.0
          %1696 = vmatprep.subr.mxu0 0.0
          %1697 = vmatpush2.msra.mxu0 0.0
          %1698 = vmatprep.subr.mxu0 0.0
          %1699 = vmatpush2.msra.mxu0 0.0
          %1700 = vmatprep.subr.mxu0 0.0
          %1701 = vmatpush2.msra.mxu0 0.0
          %1702 = vmatprep.subr.mxu0 0.0
          %1703 = vmatpush2.msra.mxu0 0.0
          %1704 = vmatprep.subr.mxu0 0.0
          %1705 = vmatpush2.msra.mxu0 0.0
          %1706 = vmatprep.subr.mxu0 0.0
          %1707 = vmatpush2.msra.mxu0 0.0
          %1708 = vmatprep.subr.mxu0 0.0
          %1709 = vmatpush2.msra.mxu0 0.0
          %1710 = vmatprep.subr.mxu0 0.0
          %1711 = vmatpush2.msra.mxu0 0.0
          %1712 = vmatprep.subr.mxu0 0.0
          %1713 = vmatpush2.msra.mxu0 0.0
          %1714 = vmatprep.mubr.f32.mxu0 0.0
          %1715 = vmatmul.mubr.f32.gmra.mxu0 %v1648
          %v1716 = vpop.f32.mrf.mxu0
          %v1717 = vadd.f32 0.0, %v1716
          %v1718 = vpop.f32.mrf.mxu0
          %1719 = vdwg.mxu0
          %v1720 = vmul.f32 %v1246, -0.001955035
          %v1721 = vmul.f32 %v1720, 1.442695
          %v1722 = vpow.pop %v1721
          %v1723 = vmul.f32 %v1238, %v1722
          %1724 = vrot.lane.b32.xlu0 %v1237, 104
          %v1725 = vpop.permute.xlu0 %1724
          %1727 = vrot.lane.b32.xlu0 %v1723, 104
          %v1728 = vpop.permute.xlu0 %1727
          %v1729 = vsel %vm1251, %v1725, 0
          %v1731 = vsel %vm1251, %v1728, 0
          %1733 = vmatprep.subr.mxu0 0.0
          %1734 = vmatpush1.xpose.msra.mxu0 0.0
          %1735 = vmatprep.subr.mxu0 0.0
          %1736 = vmatpush1.xpose.msra.mxu0 0.0
          %1737 = vmatprep.subr.mxu0 0.0
          %1738 = vmatpush1.xpose.msra.mxu0 0.0
          %1739 = vmatprep.subr.mxu0 0.0
          %1740 = vmatpush1.xpose.msra.mxu0 0.0
          %1741 = vmatprep.subr.mxu0 0.0
          %1742 = vmatpush1.xpose.msra.mxu0 0.0
          %1743 = vmatprep.subr.mxu0 0.0
          %1744 = vmatpush1.xpose.msra.mxu0 0.0
          %1745 = vmatprep.subr.mxu0 0.0
          %1746 = vmatpush1.xpose.msra.mxu0 0.0
          %1747 = vmatprep.subr.mxu0 0.0
          %1748 = vmatpush1.xpose.msra.mxu0 0.0
          %1749 = vmatprep.subr.mxu0 0.0
          %1750 = vmatpush1.xpose.msra.mxu0 0.0
          %1751 = vmatprep.subr.mxu0 0.0
          %1752 = vmatpush1.xpose.msra.mxu0 0.0
          %1753 = vmatprep.subr.mxu0 0.0
          %1754 = vmatpush1.xpose.msra.mxu0 0.0
          %1755 = vmatprep.subr.mxu0 0.0
          %1756 = vmatpush1.xpose.msra.mxu0 0.0
          %1757 = vmatprep.subr.mxu0 0.0
          %1758 = vmatpush1.xpose.msra.mxu0 0.0
          %1759 = vmatprep.subr.mxu0 0.0
          %1760 = vmatpush1.xpose.msra.mxu0 0.0
          %1761 = vmatprep.subr.mxu0 0.0
          %1762 = vmatpush1.xpose.msra.mxu0 0.0
          %1763 = vmatprep.subr.mxu0 0.0
          %1764 = vmatpush1.xpose.msra.mxu0 %v1731
          %1765 = vmatprep.subr.mxu0 0.0
          %1766 = vmatpush2.xpose.msra.mxu0 0.0
          %1767 = vmatprep.subr.mxu0 0.0
          %1768 = vmatpush2.xpose.msra.mxu0 0.0
          %1769 = vmatprep.subr.mxu0 0.0
          %1770 = vmatpush2.xpose.msra.mxu0 0.0
          %1771 = vmatprep.subr.mxu0 0.0
          %1772 = vmatpush2.xpose.msra.mxu0 0.0
          %1773 = vmatprep.subr.mxu0 0.0
          %1774 = vmatpush2.xpose.msra.mxu0 0.0
          %1775 = vmatprep.subr.mxu0 0.0
          %1776 = vmatpush2.xpose.msra.mxu0 0.0
          %1777 = vmatprep.subr.mxu0 0.0
          %1778 = vmatpush2.xpose.msra.mxu0 0.0
          %1779 = vmatprep.subr.mxu0 0.0
          %1780 = vmatpush2.xpose.msra.mxu0 0.0
          %1781 = vmatprep.subr.mxu0 0.0
          %1782 = vmatpush2.xpose.msra.mxu0 0.0
          %1783 = vmatprep.subr.mxu0 0.0
          %1784 = vmatpush2.xpose.msra.mxu0 0.0
          %1785 = vmatprep.subr.mxu0 0.0
          %1786 = vmatpush2.xpose.msra.mxu0 0.0
          %1787 = vmatprep.subr.mxu0 0.0
          %1788 = vmatpush2.xpose.msra.mxu0 0.0
          %1789 = vmatprep.subr.mxu0 0.0
          %1790 = vmatpush2.xpose.msra.mxu0 0.0
          %1791 = vmatprep.subr.mxu0 0.0
          %1792 = vmatpush2.xpose.msra.mxu0 0.0
          %1793 = vmatprep.subr.mxu0 0.0
          %1794 = vmatpush2.xpose.msra.mxu0 0.0
          %1795 = vmatprep.subr.mxu0 0.0
          %1796 = vmatpush2.xpose.msra.mxu0 0.0
          %1797 = vmatprep.mubr.f32.mxu0 0.0
          %1798 = vmatmul.mubr.f32.gmra.mxu0 %v1729
          %v1799 = vpop.f32.mrf.mxu0
          %v1800 = vadd.f32 0.0, %v1799
          %v1801 = vpop.f32.mrf.mxu0
          %1802 = vdwg.mxu0
          %1803 = vrot.lane.b32.xlu0 %v1239, 104
          %v1804 = vpop.permute.xlu0 %1803
          %v1807 = vsel %vm1251, %v1800, 0
          %1809 = vmatprep.subr.mxu0 0.0
          %1810 = vmatpush1.msra.mxu0 0.0
          %1811 = vmatprep.subr.mxu0 0.0
          %1812 = vmatpush1.msra.mxu0 0.0
          %1813 = vmatprep.subr.mxu0 0.0
          %1814 = vmatpush1.msra.mxu0 0.0
          %1815 = vmatprep.subr.mxu0 0.0
          %1816 = vmatpush1.msra.mxu0 0.0
          %1817 = vmatprep.subr.mxu0 0.0
          %1818 = vmatpush1.msra.mxu0 0.0
          %1819 = vmatprep.subr.mxu0 0.0
          %1820 = vmatpush1.msra.mxu0 0.0
          %1821 = vmatprep.subr.mxu0 0.0
          %1822 = vmatpush1.msra.mxu0 0.0
          %1823 = vmatprep.subr.mxu0 0.0
          %1824 = vmatpush1.msra.mxu0 0.0
          %1825 = vmatprep.subr.mxu0 0.0
          %1826 = vmatpush1.msra.mxu0 0.0
          %1827 = vmatprep.subr.mxu0 0.0
          %1828 = vmatpush1.msra.mxu0 0.0
          %1829 = vmatprep.subr.mxu0 0.0
          %1830 = vmatpush1.msra.mxu0 0.0
          %1831 = vmatprep.subr.mxu0 0.0
          %1832 = vmatpush1.msra.mxu0 0.0
          %1833 = vmatprep.subr.mxu0 0.0
          %1834 = vmatpush1.msra.mxu0 0.0
          %1835 = vmatprep.subr.mxu0 0.0
          %1836 = vmatpush1.msra.mxu0 0.0
          %1837 = vmatprep.subr.mxu0 0.0
          %1838 = vmatpush1.msra.mxu0 0.0
          %1839 = vmatprep.subr.mxu0 0.0
          %1840 = vmatpush1.msra.mxu0 %v1804
          %1841 = vmatprep.subr.mxu0 0.0
          %1842 = vmatpush2.msra.mxu0 0.0
          %1843 = vmatprep.subr.mxu0 0.0
          %1844 = vmatpush2.msra.mxu0 0.0
          %1845 = vmatprep.subr.mxu0 0.0
          %1846 = vmatpush2.msra.mxu0 0.0
          %1847 = vmatprep.subr.mxu0 0.0
          %1848 = vmatpush2.msra.mxu0 0.0
          %1849 = vmatprep.subr.mxu0 0.0
          %1850 = vmatpush2.msra.mxu0 0.0
          %1851 = vmatprep.subr.mxu0 0.0
          %1852 = vmatpush2.msra.mxu0 0.0
          %1853 = vmatprep.subr.mxu0 0.0
          %1854 = vmatpush2.msra.mxu0 0.0
          %1855 = vmatprep.subr.mxu0 0.0
          %1856 = vmatpush2.msra.mxu0 0.0
          %1857 = vmatprep.subr.mxu0 0.0
          %1858 = vmatpush2.msra.mxu0 0.0
          %1859 = vmatprep.subr.mxu0 0.0
          %1860 = vmatpush2.msra.mxu0 0.0
          %1861 = vmatprep.subr.mxu0 0.0
          %1862 = vmatpush2.msra.mxu0 0.0
          %1863 = vmatprep.subr.mxu0 0.0
          %1864 = vmatpush2.msra.mxu0 0.0
          %1865 = vmatprep.subr.mxu0 0.0
          %1866 = vmatpush2.msra.mxu0 0.0
          %1867 = vmatprep.subr.mxu0 0.0
          %1868 = vmatpush2.msra.mxu0 0.0
          %1869 = vmatprep.subr.mxu0 0.0
          %1870 = vmatpush2.msra.mxu0 0.0
          %1871 = vmatprep.subr.mxu0 0.0
          %1872 = vmatpush2.msra.mxu0 0.0
          %1873 = vmatprep.mubr.f32.mxu0 0.0
          %1874 = vmatmul.mubr.f32.gmra.mxu0 %v1807
          %v1875 = vpop.f32.mrf.mxu0
          %v1876 = vadd.f32 0.0, %v1875
          %v1877 = vpop.f32.mrf.mxu0
          %1878 = vdwg.mxu0
          %v1879 = vld [vmem:[#allocation2] sm:$0xff]
          %1881 = vrot.lane.b32.xlu0 %v1558, 8
          %v1882 = vpop.permute.xlu0 %1881
          %1885 = vrot.lane.b32.xlu0 %v1717, 16
          %v1886 = vpop.permute.xlu0 %1885
          %1889 = vrot.lane.b32.xlu0 %v1876, 24
          %v1890 = vpop.permute.xlu0 %1889
          %v1892 = vsel %vm1251, %v1398, %v1882
          %vm1893 = vcmask 130048
          %v1894 = vsel %vm1893, %v1892, %v1886
          %vm1895 = vcmask 195584
          %v1896 = vsel %vm1895, %v1894, %v1890
          %v1897 = vadd.f32 %v1879, %v1896
          %vm1898 = vcmask 261120
          %1899 = vst.msk [vmem:[#allocation2] sm:$0xff] %vm1898, %v1897
        $region88: #{tpu_custom_call.1} parent=51 // pred_fallthru
          _
        %s1900 = sadd.s32 %s520, 8
        %s1901 = sadd.s32 %s519, 8
        %p1902 = scmp.ge.s32.totalorder %s1900, %s1901
        // Predicated region
        $region89: #{tpu_custom_call.1} parent=51 // pred_check
          %p1903 = pneg %p1902
        $region90: #{tpu_custom_call.1} parent=51 // pred_check_branch
          %1905 = sbr.rel (%p1903) target = $region92
        $region91: #{tpu_custom_call.1} parent=51 // pred_region
          %v1906 = vld [vmem:[#allocation2] sm:$0xff]
          %vm1907 = vcmask 64512
          %v1908 = vsel %vm1907, %v1906, 0.0
          %1909 = vadd.xlane.f32.xlu0 %v1908
          %v1910 = vpop.xlane.xlu0 %1909
          %v1911 = vrcp.pop 8.0
          %v1912 = vmul.f32 %v1910, %v1911
          %v1913 = vsub.f32 %v1906, %v1912
          %v1914 = vmul.f32 %v1913, %v1913
          %v1915 = vsel %vm1907, %v1914, 0.0
          %1916 = vadd.xlane.f32.xlu0 %v1915
          %v1917 = vpop.xlane.xlu0 %1916
          %v1918 = vmul.f32 %v1917, %v1911
          %v1919 = vadd.f32 %v1918, 1e-05
          %v1920 = vrsqrt.pop %v1919
          %v1921 = vmul.f32 %v1913, %v1920
          %1923 = vrot.lane.b32.xlu0 %v1906, 120
          %v1924 = vpop.permute.xlu0 %1923
          %v1926 = vsel %vm1907, %v1924, 0.0
          %1927 = vadd.xlane.f32.xlu0 %v1926
          %v1928 = vpop.xlane.xlu0 %1927
          %v1929 = vmul.f32 %v1928, %v1911
          %v1930 = vsub.f32 %v1906, %v1929
          %v1931 = vmul.f32 %v1930, %v1930
          %1933 = vrot.lane.b32.xlu0 %v1931, 120
          %v1934 = vpop.permute.xlu0 %1933
          %v1936 = vsel %vm1907, %v1934, 0.0
          %1937 = vadd.xlane.f32.xlu0 %v1936
          %v1938 = vpop.xlane.xlu0 %1937
          %v1939 = vmul.f32 %v1938, %v1911
          %v1940 = vadd.f32 %v1939, 1e-05
          %v1941 = vrsqrt.pop %v1940
          %v1942 = vmul.f32 %v1930, %v1941
          %1943 = vrot.lane.b32.xlu0 %v1906, 112
          %v1944 = vpop.permute.xlu0 %1943
          %v1946 = vsel %vm1907, %v1944, 0.0
          %1947 = vadd.xlane.f32.xlu0 %v1946
          %v1948 = vpop.xlane.xlu0 %1947
          %v1949 = vmul.f32 %v1948, %v1911
          %v1950 = vsub.f32 %v1906, %v1949
          %v1951 = vmul.f32 %v1950, %v1950
          %1953 = vrot.lane.b32.xlu0 %v1951, 112
          %v1954 = vpop.permute.xlu0 %1953
          %v1956 = vsel %vm1907, %v1954, 0.0
          %1957 = vadd.xlane.f32.xlu0 %v1956
          %v1958 = vpop.xlane.xlu0 %1957
          %v1959 = vmul.f32 %v1958, %v1911
          %v1960 = vadd.f32 %v1959, 1e-05
          %v1961 = vrsqrt.pop %v1960
          %v1962 = vmul.f32 %v1950, %v1961
          %1963 = vrot.lane.b32.xlu0 %v1906, 104
          %v1964 = vpop.permute.xlu0 %1963
          %v1966 = vsel %vm1907, %v1964, 0.0
          %1967 = vadd.xlane.f32.xlu0 %v1966
          %v1968 = vpop.xlane.xlu0 %1967
          %v1969 = vmul.f32 %v1968, %v1911
          %v1970 = vsub.f32 %v1906, %v1969
          %v1971 = vmul.f32 %v1970, %v1970
          %1973 = vrot.lane.b32.xlu0 %v1971, 104
          %v1974 = vpop.permute.xlu0 %1973
          %v1976 = vsel %vm1907, %v1974, 0.0
          %1977 = vadd.xlane.f32.xlu0 %v1976
          %v1978 = vpop.xlane.xlu0 %1977
          %v1979 = vmul.f32 %v1978, %v1911
          %v1980 = vadd.f32 %v1979, 1e-05
          %v1981 = vrsqrt.pop %v1980
          %v1982 = vmul.f32 %v1970, %v1981
          %v1983 = vsel %vm1907, %v1921, %v1942
          %vm1984 = vcmask 130048
          %v1985 = vsel %vm1984, %v1983, %v1962
          %vm1986 = vcmask 195584
          %v1987 = vsel %vm1986, %v1985, %v1982
          %v1988 = vld [vmem:[%s8] sm:$0x1]
          %v1990 = vlaneseq
          %v1991 = vshrl.u32 %v1990, 7
          %v1992 = vsub.s32 0, %v1991
          %v1993 = vrot.slane %v1988, %v1992
          %v1995 = vmul.f32 %v1987, %v1993
          %v1996 = vld [vmem:[%s9] sm:$0x1]
          %v1998 = vlaneseq
          %v1999 = vshrl.u32 %v1998, 7
          %v2000 = vsub.s32 0, %v1999
          %v2001 = vrot.slane %v1996, %v2000
          %v2003 = vadd.f32 %v1995, %v2001
          %v2004 = vld [vmem:[%s429] sm:$0xff]
          %v2005 = vld [vmem:[#allocation15] sm:$0xff]
          %v2006 = vld [vmem:[#allocation15 + $0x8] sm:$0xff]
          %v2007 = vld [vmem:[#allocation15 + $0x10] sm:$0xff]
          %v2008 = vld [vmem:[#allocation15 + $0x18] sm:$0xff]
          %vm2009 = vcmask 261120
          %v2011 = vsel %vm2009, %v2004, 0
          %2013 = vmatprep.subr.mxu0 0.0
          %2014 = vmatpush1.msra.mxu0 0.0
          %2015 = vmatprep.subr.mxu0 0.0
          %2016 = vmatpush1.msra.mxu0 0.0
          %2017 = vmatprep.subr.mxu0 0.0
          %2018 = vmatpush1.msra.mxu0 0.0
          %2019 = vmatprep.subr.mxu0 0.0
          %2020 = vmatpush1.msra.mxu0 0.0
          %2021 = vmatprep.subr.mxu0 0.0
          %2022 = vmatpush1.msra.mxu0 0.0
          %2023 = vmatprep.subr.mxu0 0.0
          %2024 = vmatpush1.msra.mxu0 0.0
          %2025 = vmatprep.subr.mxu0 0.0
          %2026 = vmatpush1.msra.mxu0 0.0
          %2027 = vmatprep.subr.mxu0 0.0
          %2028 = vmatpush1.msra.mxu0 0.0
          %2029 = vmatprep.subr.mxu0 0.0
          %2030 = vmatpush1.msra.mxu0 0.0
          %2031 = vmatprep.subr.mxu0 0.0
          %2032 = vmatpush1.msra.mxu0 0.0
          %2033 = vmatprep.subr.mxu0 0.0
          %2034 = vmatpush1.msra.mxu0 0.0
          %2035 = vmatprep.subr.mxu0 0.0
          %2036 = vmatpush1.msra.mxu0 0.0
          %2037 = vmatprep.subr.mxu0 0.0
          %2038 = vmatpush1.msra.mxu0 %v2008
          %2039 = vmatprep.subr.mxu0 0.0
          %2040 = vmatpush1.msra.mxu0 %v2007
          %2041 = vmatprep.subr.mxu0 0.0
          %2042 = vmatpush1.msra.mxu0 %v2006
          %2043 = vmatprep.subr.mxu0 0.0
          %2044 = vmatpush1.msra.mxu0 %v2005
          %2045 = vmatprep.subr.mxu0 0.0
          %2046 = vmatpush2.msra.mxu0 0.0
          %2047 = vmatprep.subr.mxu0 0.0
          %2048 = vmatpush2.msra.mxu0 0.0
          %2049 = vmatprep.subr.mxu0 0.0
          %2050 = vmatpush2.msra.mxu0 0.0
          %2051 = vmatprep.subr.mxu0 0.0
          %2052 = vmatpush2.msra.mxu0 0.0
          %2053 = vmatprep.subr.mxu0 0.0
          %2054 = vmatpush2.msra.mxu0 0.0
          %2055 = vmatprep.subr.mxu0 0.0
          %2056 = vmatpush2.msra.mxu0 0.0
          %2057 = vmatprep.subr.mxu0 0.0
          %2058 = vmatpush2.msra.mxu0 0.0
          %2059 = vmatprep.subr.mxu0 0.0
          %2060 = vmatpush2.msra.mxu0 0.0
          %2061 = vmatprep.subr.mxu0 0.0
          %2062 = vmatpush2.msra.mxu0 0.0
          %2063 = vmatprep.subr.mxu0 0.0
          %2064 = vmatpush2.msra.mxu0 0.0
          %2065 = vmatprep.subr.mxu0 0.0
          %2066 = vmatpush2.msra.mxu0 0.0
          %2067 = vmatprep.subr.mxu0 0.0
          %2068 = vmatpush2.msra.mxu0 0.0
          %2069 = vmatprep.subr.mxu0 0.0
          %2070 = vmatpush2.msra.mxu0 0.0
          %2071 = vmatprep.subr.mxu0 0.0
          %2072 = vmatpush2.msra.mxu0 0.0
          %2073 = vmatprep.subr.mxu0 0.0
          %2074 = vmatpush2.msra.mxu0 0.0
          %2075 = vmatprep.subr.mxu0 0.0
          %2076 = vmatpush2.msra.mxu0 0.0
          %2077 = vmatprep.mubr.f32.mxu0 0.0
          %2078 = vmatmul.mubr.f32.gmra.mxu0 %v2011
          %v2079 = vpop.f32.mrf.mxu0
          %v2080 = vadd.f32 0.0, %v2079
          %v2081 = vpop.f32.mrf.mxu0
          %2082 = vdwg.mxu0
          %v2083 = vxor.u32 %v2080, 2147483648
          %v2084 = vmul.f32 %v2083, 1.442695
          %v2085 = vpow.pop %v2084
          %v2086 = vadd.f32 %v2085, 1.0
          %v2087 = vrcp.pop %v2086
          %v2088 = vmul.f32 1.0, %v2087
          %v2089 = vmul.f32 %v2080, %v2088
          %v2090 = vmul.f32 %v2089, %v2003
          %v2091 = vld [vmem:[#allocation16] sm:$0xff]
          %v2092 = vld [vmem:[#allocation16 + $0x8] sm:$0xff]
          %v2093 = vld [vmem:[#allocation16 + $0x10] sm:$0xff]
          %v2094 = vld [vmem:[#allocation16 + $0x18] sm:$0xff]
          %v2096 = vsel %vm2009, %v2090, 0
          %2098 = vmatprep.subr.mxu0 0.0
          %2099 = vmatpush1.msra.mxu0 0.0
          %2100 = vmatprep.subr.mxu0 0.0
          %2101 = vmatpush1.msra.mxu0 0.0
          %2102 = vmatprep.subr.mxu0 0.0
          %2103 = vmatpush1.msra.mxu0 0.0
          %2104 = vmatprep.subr.mxu0 0.0
          %2105 = vmatpush1.msra.mxu0 0.0
          %2106 = vmatprep.subr.mxu0 0.0
          %2107 = vmatpush1.msra.mxu0 0.0
          %2108 = vmatprep.subr.mxu0 0.0
          %2109 = vmatpush1.msra.mxu0 0.0
          %2110 = vmatprep.subr.mxu0 0.0
          %2111 = vmatpush1.msra.mxu0 0.0
          %2112 = vmatprep.subr.mxu0 0.0
          %2113 = vmatpush1.msra.mxu0 0.0
          %2114 = vmatprep.subr.mxu0 0.0
          %2115 = vmatpush1.msra.mxu0 0.0
          %2116 = vmatprep.subr.mxu0 0.0
          %2117 = vmatpush1.msra.mxu0 0.0
          %2118 = vmatprep.subr.mxu0 0.0
          %2119 = vmatpush1.msra.mxu0 0.0
          %2120 = vmatprep.subr.mxu0 0.0
          %2121 = vmatpush1.msra.mxu0 0.0
          %2122 = vmatprep.subr.mxu0 0.0
          %2123 = vmatpush1.msra.mxu0 %v2094
          %2124 = vmatprep.subr.mxu0 0.0
          %2125 = vmatpush1.msra.mxu0 %v2093
          %2126 = vmatprep.subr.mxu0 0.0
          %2127 = vmatpush1.msra.mxu0 %v2092
          %2128 = vmatprep.subr.mxu0 0.0
          %2129 = vmatpush1.msra.mxu0 %v2091
          %2130 = vmatprep.subr.mxu0 0.0
          %2131 = vmatpush2.msra.mxu0 0.0
          %2132 = vmatprep.subr.mxu0 0.0
          %2133 = vmatpush2.msra.mxu0 0.0
          %2134 = vmatprep.subr.mxu0 0.0
          %2135 = vmatpush2.msra.mxu0 0.0
          %2136 = vmatprep.subr.mxu0 0.0
          %2137 = vmatpush2.msra.mxu0 0.0
          %2138 = vmatprep.subr.mxu0 0.0
          %2139 = vmatpush2.msra.mxu0 0.0
          %2140 = vmatprep.subr.mxu0 0.0
          %2141 = vmatpush2.msra.mxu0 0.0
          %2142 = vmatprep.subr.mxu0 0.0
          %2143 = vmatpush2.msra.mxu0 0.0
          %2144 = vmatprep.subr.mxu0 0.0
          %2145 = vmatpush2.msra.mxu0 0.0
          %2146 = vmatprep.subr.mxu0 0.0
          %2147 = vmatpush2.msra.mxu0 0.0
          %2148 = vmatprep.subr.mxu0 0.0
          %2149 = vmatpush2.msra.mxu0 0.0
          %2150 = vmatprep.subr.mxu0 0.0
          %2151 = vmatpush2.msra.mxu0 0.0
          %2152 = vmatprep.subr.mxu0 0.0
          %2153 = vmatpush2.msra.mxu0 0.0
          %2154 = vmatprep.subr.mxu0 0.0
          %2155 = vmatpush2.msra.mxu0 0.0
          %2156 = vmatprep.subr.mxu0 0.0
          %2157 = vmatpush2.msra.mxu0 0.0
          %2158 = vmatprep.subr.mxu0 0.0
          %2159 = vmatpush2.msra.mxu0 0.0
          %2160 = vmatprep.subr.mxu0 0.0
          %2161 = vmatpush2.msra.mxu0 0.0
          %2162 = vmatprep.mubr.f32.mxu0 0.0
          %2163 = vmatmul.mubr.f32.gmra.mxu0 %v2096
          %v2164 = vpop.f32.mrf.mxu0
          %v2165 = vadd.f32 0.0, %v2164
          %v2166 = vpop.f32.mrf.mxu0
          %2167 = vdwg.mxu0
          %2168 = vst.msk [vmem:[%s511] sm:$0xff] %vm2009, %v2165
        $region92: #{tpu_custom_call.1} parent=51 // pred_fallthru
          _
        %s2169 = sand.u32 %s270, 1
        %s2170 = scalar_lea.sflag [#allocation9], %s2169
        %s2171 = sand.u32 %s270, 1
        %s2172 = smul.addr %s2171, 8
        %s2173 = scalar_lea.vmem [#allocation18], %s2172
        // Predicated region
        $region93: #{tpu_custom_call.1} parent=51 // pred_check
          %p2174 = pneg %p280
        $region94: #{tpu_custom_call.1} parent=51 // pred_check_branch
          %2176 = sbr.rel (%p2174) target = $region96
        $region95: #{tpu_custom_call.1} parent=51 // pred_region
          %s2177 = sld [smem:[#allocation5 + %s47]]
          %s2179 = ssub.s32 128, 128
          %2180 = vsyncadd %s2170, %s2179
          %s2181 = smul.addr %s46, 2
          %s2182 = sadd.s32 %s2177, %s2181
          %s2183 = smul.addr %s2182, 128
          %s2184 = scalar_lea.hbm %s10, %s2183
          %s2186 = sshll.u32 %s2173, 4
          %s2187 = int_to_ptr.vmem [resolvable:$true] %s2186
          %2189 = dma.vmem_to_hbm [thread:$0]  %s2187, 128, %s2184, %s2170
        $region96: #{tpu_custom_call.1} parent=51 // pred_fallthru
          _
      $region52: #{tpu_custom_call.1} parent=5 // pred_fallthru
        _
      %p2190 = scmp.le.s32.totalorder 2, %s37
      // Predicated region
      $region97: #{tpu_custom_call.1} parent=5 // pred_check
        %p2191 = pneg %p2190
      $region98: #{tpu_custom_call.1} parent=5 // pred_check_branch
        %2193 = sbr.rel (%p2191) target = $region100
      $region99: #{tpu_custom_call.1} parent=5 // pred_region
        %s2194 = ssub.s32 %s37, 2
        // Predicated region
        $region101: #{tpu_custom_call.1} parent=99 // pred_check
          %p2195 = pneg %p286
        $region102: #{tpu_custom_call.1} parent=99 // pred_check_branch
          %2197 = sbr.rel (%p2195) target = $region104
        $region103: #{tpu_custom_call.1} parent=99 // pred_region
          %s2198 = sand.u32 %s271, 1
          %s2199 = scalar_lea.sflag [#allocation9], %s2198
          %s2200 = sand.u32 %s271, 1
          %s2201 = smul.addr %s2200, 8
          %s2202 = scalar_lea.vmem [#allocation18], %s2201
          %2203 = dma.done %s2199, 128
        $region104: #{tpu_custom_call.1} parent=99 // pred_fallthru
          _
      $region100: #{tpu_custom_call.1} parent=5 // pred_fallthru
        _
    $region6: #{tpu_custom_call.1} parent=1 // loop_footer
      %s41 = sadd.s32 1, %s37
    $region7: #{tpu_custom_call.1} parent=1 // loop_footer_branch
      %36 = sbr.rel target = $region3
    $region8: #{tpu_custom_call.1} parent=1 // loop_exit
      _
    %2204 = vsyncpa [#allocation8], 1
    %s2205 = scalar_lea.sflag [#allocation8], 1
    %2206 = vsyncpa %s2205, 1
    %2207 = vsyncpa [#allocation11], 1
    %s2208 = scalar_lea.sflag [#allocation11], 1
    %2209 = vsyncpa %s2208, 1
    %2210 = vsyncpa [#allocation14], 1
    %s2211 = scalar_lea.sflag [#allocation14], 1
    %2212 = vsyncpa %s2211, 1
    %2213 = vsyncpa [#allocation17], 1
    %2214 = vsyncpa [#allocation9], 1
    %s2215 = scalar_lea.sflag [#allocation9], 1
    %2216 = vsyncpa %s2215, 1

</llo_original>
